<compile_context>
chip_gen: v6e
topology: v6e:2x2x1
jax: 0.10.0
libtpu: 0.0.40
codegen_flags: <defaults>
</compile_context>

<pallas_src>
import functools

import numpy as np
import jax
import jax.numpy as jnp
from jax.experimental import pallas as pl
from jax.experimental.pallas import tpu as pltpu


def scdown1d_kernel(x_ref, w1_ref, b1_ref, w2_ref, b2_ref, sel_ref, o_ref,
                    *, ksize, pad, nb):
    c2 = w1_ref.shape[0]
    L = x_ref.shape[-1]

    # Weights / constants: loaded once per grid step (VMEM resident, constant index_maps).
    w1 = w1_ref[...]                              # (c2, c1)   bf16
    b1 = b1_ref[...]                              # (c2, 1)    f32
    w2 = w2_ref[...]                              # (c2, k)    f32
    b2 = b2_ref[...]                              # (c2, 1)    f32
    sel = sel_ref[...].astype(jnp.float32)        # (L, l_out) exact 0/1, f32 for the MXU

    # Per-tap zero-padding masks, hoisted out of the batch loop.
    lane = jax.lax.broadcasted_iota(jnp.int32, (c2, L), dimension=1)
    masks = []
    for t in range(ksize):
        d = t - pad
        if d == 0:
            masks.append(None)
        elif d > 0:
            masks.append(lane < L - d)            # lanes that wrapped at the tail
        else:
            masks.append(lane >= -d)              # lanes that wrapped at the head

    for b in range(nb):
        # ---- cv1: folded 1x1 conv (+BN) == channel matmul (bf16 MXU, f32 acc) + SiLU.
        x = x_ref[b].astype(jnp.bfloat16)                               # (c1, L)
        z = jnp.dot(w1, x, preferred_element_type=jnp.float32) + b1    # (c2, L) f32
        # SiLU(z) = z * sigmoid(z); sigmoid via tanh keeps the transcendental on the EUP.
        y1 = z * (0.5 * jnp.tanh(0.5 * z) + 0.5)                        # (c2, L) f32

        # ---- cv2: depthwise k-tap combine at full resolution (f32, XLU rolls + VPU FMAs).
        acc = None
        for t in range(ksize):
            d = t - pad
            if d == 0:
                tapped = y1
            else:
                # tapped[i] = y1[i + d]; positive-only cyclic roll, wrapped lanes are the
                # conv's zero padding and get masked to 0.
                tapped = pltpu.roll(y1, shift=(L - d) if d > 0 else -d, axis=1)
                tapped = jnp.where(masks[t], tapped, 0.0)
            term = w2[:, t:t + 1] * tapped
            acc = term if acc is None else acc + term                   # (c2, L) f32

        # ---- stride-s downsample: one f32 MXU matmul against the constant 0/1 selector.
        out_b = jnp.dot(acc, sel, preferred_element_type=jnp.float32) + b2
        o_ref[b] = out_b.astype(o_ref.dtype)


@functools.lru_cache(maxsize=None)
def _downsample_selector(L, stride, l_out):
    """(L, l_out) 0/1 matrix: column j picks input lane j*stride (stride-s downsample).

    Built host-side with NumPy and memoized (true constant, never recomputed per call).
    bf16 storage is exact for 0/1 and halves constant DMA; the kernel casts it to f32.
    """
    sel = np.zeros((L, l_out), dtype=np.float32)
    sel[np.arange(l_out) * stride, np.arange(l_out)] = 1.0
    return jnp.asarray(sel, dtype=jnp.bfloat16)


def scdown1d_forward(x, params, *, ksize, stride):
    """x: (B, c1, L); params are BN-folded (w1, b1, w2, b2)."""
    w1, b1, w2, b2 = params
    B, c1, L = x.shape
    c2 = w1.shape[0]
    pad = ksize // 2
    l_out = (L + 2 * pad - ksize) // stride + 1
    # Full-resolution tap combine needs the last strided pick in-bounds (true for odd k,
    # e.g. YOLOv10's k=3).
    assert (l_out - 1) * stride < L, "even-k boundary case not supported by this kernel"

    # Fat grid steps: largest divisor of B up to 8 batch elements per step.
    nb = max(d for d in range(1, min(B, 8) + 1) if B % d == 0)

    sel = _downsample_selector(L, stride, l_out)       # (L, l_out) bf16, memoized
    w1b = w1.astype(jnp.bfloat16)                      # cv1 MXU operand in bf16
    b1c = b1[:, None].astype(jnp.float32)
    w2f = w2.astype(jnp.float32)
    b2c = b2[:, None].astype(jnp.float32)

    kernel = functools.partial(scdown1d_kernel, ksize=ksize, pad=pad, nb=nb)

    grid_spec = pltpu.PrefetchScalarGridSpec(
        num_scalar_prefetch=0,
        grid=(B // nb,),
        in_specs=[
            pl.BlockSpec((nb, c1, L), lambda b: (b, 0, 0)),      # x block (nb batches)
            pl.BlockSpec((c2, c1), lambda b: (0, 0)),            # cv1 weight (bf16)
            pl.BlockSpec((c2, 1), lambda b: (0, 0)),             # cv1 bias
            pl.BlockSpec((c2, ksize), lambda b: (0, 0)),         # cv2 depthwise taps
            pl.BlockSpec((c2, 1), lambda b: (0, 0)),             # cv2 bias
            pl.BlockSpec((L, l_out), lambda b: (0, 0)),          # stride-s selector
        ],
        out_specs=pl.BlockSpec((nb, c2, l_out), lambda b: (b, 0, 0)),
    )

    cost = pl.CostEstimate(
        flops=B * (2 * c2 * c1 * L + 2 * ksize * c2 * L + 2 * c2 * L * l_out),
        transcendentals=B * c2 * L,
        bytes_accessed=(x.size * x.dtype.itemsize + B * c2 * l_out * 4
                        + (c2 * c1 + L * l_out) * 2 + c2 * (ksize + 2) * 4),
    )

    return pl.pallas_call(
        kernel,
        out_shape=jax.ShapeDtypeStruct((B, c2, l_out), x.dtype),
        grid_spec=grid_spec,
        cost_estimate=cost,
        compiler_params=pltpu.CompilerParams(dimension_semantics=("parallel",)),
    )(x, w1b, b1c, w2f, b2c, sel)


def init_conv_bn(key, c_out, c_in_per_group, ksize):
    """Deterministic init of Conv1d(bias=False) + BatchNorm1d, folded for inference."""
    k1, k2, k3 = jax.random.split(key, 3)
    w = jax.random.normal(k1, (c_out, c_in_per_group, ksize), jnp.float32) * 0.1
    gamma = 1.0 + 0.1 * jax.random.normal(k2, (c_out,), jnp.float32)
    beta = 0.1 * jax.random.normal(k3, (c_out,), jnp.float32)
    running_mean = jnp.zeros((c_out,), jnp.float32)
    running_var = jnp.ones((c_out,), jnp.float32)
    eps = 1e-5
    s = gamma / jnp.sqrt(running_var + eps)
    w_fold = w * s[:, None, None]
    b_fold = beta - running_mean * s
    return w_fold, b_fold


def reference_forward(x, params, *, ksize, stride):
    """Pure-JAX reference mirroring the PyTorch forward (for verification)."""
    w1, b1, w2, b2 = params
    B, c1, L = x.shape
    c2 = w1.shape[0]
    pad = ksize // 2
    l_out = (L + 2 * pad - ksize) // stride + 1

    # cv1: 1x1 conv + BN (folded) + SiLU
    y1 = jnp.einsum('oc,bcl->bol', w1, x) + b1[None, :, None]
    y1 = y1 * jax.nn.sigmoid(y1)

    # cv2: depthwise conv, kernel=ksize, stride, pad, + BN (folded), no act
    yp = jnp.pad(y1, ((0, 0), (0, 0), (pad, pad)))
    out = jnp.zeros((B, c2, l_out), jnp.float32)
    for t in range(ksize):
        out = out + w2[None, :, t:t + 1] * yp[:, :, t::stride][:, :, :l_out]
    return out + b2[None, :, None]


if __name__ == "__main__":
    # Module config: SCDown1d(c1=32, c2=64, k=3, s=2) on x: (B=2, 32, 256) -> (2, 64, 128)
    B, c1, c2, L = 2, 32, 64, 256
    ksize, stride = 3, 2

    root = jax.random.PRNGKey(0)
    kx, kc1, kc2 = jax.random.split(root, 3)

    x = jax.random.normal(kx, (B, c1, L), jnp.float32)

    w1_3, b1 = init_conv_bn(kc1, c2, c1, 1)        # Conv1d(c1, c2, 1)        + BN
    w2_3, b2 = init_conv_bn(kc2, c2, 1, ksize)     # Conv1d(c2, c2, k, g=c2)  + BN

    params = (
        w1_3[:, :, 0],      # (c2, c1)
        b1,                 # (c2,)
        w2_3[:, 0, :],      # (c2, ksize)
        b2,                 # (c2,)
    )

    out = scdown1d_forward(x, params, ksize=ksize, stride=stride)
    out = jax.block_until_ready(out)

    ref = reference_forward(x, params, ksize=ksize, stride=stride)
    l_out = (L + 2 * (ksize // 2) - ksize) // stride + 1
    assert out.shape == (B, c2, l_out), out.shape
    max_err = float(jnp.max(jnp.abs(out - ref)))
    # Only cv1's MXU operands are bf16 now (tap combine + downsample are f32).
    assert jnp.allclose(out, ref, rtol=1e-2, atol=1e-2), max_err

    print("KERNEL_OK")
</pallas_src>

<mosaic_0001>
module attributes {stable_mosaic.version = 11 : i64} {
  func.func @scdown1d_kernel(%arg0: i32, %arg1: memref<2x32x256xf32, #tpu.memory_space<vmem>>, %arg2: memref<64x32xbf16, #tpu.memory_space<vmem>>, %arg3: memref<64x1xf32, #tpu.memory_space<vmem>>, %arg4: memref<64x3xf32, #tpu.memory_space<vmem>>, %arg5: memref<64x1xf32, #tpu.memory_space<vmem>>, %arg6: memref<256x128xbf16, #tpu.memory_space<vmem>>, %arg7: memref<2x64x128xf32, #tpu.memory_space<vmem>>) attributes {dimension_semantics = [#tpu.dimension_semantics<parallel>], iteration_bounds = array<i64: 1>, scalar_prefetch = 0 : i64, scratch_operands = 0 : i64, tpu.core_type = #tpu.core_type<tc>, window_params = [{transform_indices = @transform_0, window_bounds = array<i64: 2, 32, 256>}, {pipeline_mode = #tpu.pipeline_mode<synchronous>, transform_indices = @transform_1, window_bounds = array<i64: 64, 32>}, {pipeline_mode = #tpu.pipeline_mode<synchronous>, transform_indices = @transform_2, window_bounds = array<i64: 64, 1>}, {pipeline_mode = #tpu.pipeline_mode<synchronous>, transform_indices = @transform_3, window_bounds = array<i64: 64, 3>}, {pipeline_mode = #tpu.pipeline_mode<synchronous>, transform_indices = @transform_4, window_bounds = array<i64: 64, 1>}, {pipeline_mode = #tpu.pipeline_mode<synchronous>, transform_indices = @transform_5, window_bounds = array<i64: 256, 128>}, {transform_indices = @transform_6, window_bounds = array<i64: 2, 64, 128>}]} {
    %c0 = arith.constant 0 : index
    %c0_0 = arith.constant 0 : index
    %0 = vector.load %arg2[%c0, %c0_0] : memref<64x32xbf16, #tpu.memory_space<vmem>>, vector<64x32xbf16>
    %c0_1 = arith.constant 0 : index
    %c0_2 = arith.constant 0 : index
    %1 = vector.load %arg3[%c0_1, %c0_2] : memref<64x1xf32, #tpu.memory_space<vmem>>, vector<64x1xf32>
    %c0_3 = arith.constant 0 : index
    %c0_4 = arith.constant 0 : index
    %2 = vector.load %arg4[%c0_3, %c0_4] : memref<64x3xf32, #tpu.memory_space<vmem>>, vector<64x3xf32>
    %c0_5 = arith.constant 0 : index
    %c0_6 = arith.constant 0 : index
    %3 = vector.load %arg5[%c0_5, %c0_6] : memref<64x1xf32, #tpu.memory_space<vmem>>, vector<64x1xf32>
    %c0_7 = arith.constant 0 : index
    %c0_8 = arith.constant 0 : index
    %4 = vector.load %arg6[%c0_7, %c0_8] : memref<256x128xbf16, #tpu.memory_space<vmem>>, vector<256x128xbf16>
    %5 = arith.extf %4 : vector<256x128xbf16> to vector<256x128xf32>
    %6 = tpu.iota {dimensions = array<i32: 1>} : vector<64x256xi32>
    %c1_i32 = arith.constant 1 : i32
    %7 = vector.broadcast %c1_i32 : i32 to vector<64x256xi32>
    %8 = arith.cmpi sge, %6, %7 : vector<64x256xi32>
    %c255_i32 = arith.constant 255 : i32
    %9 = vector.broadcast %c255_i32 : i32 to vector<64x256xi32>
    %10 = arith.cmpi slt, %6, %9 : vector<64x256xi32>
    %c0_9 = arith.constant 0 : index
    %c0_10 = arith.constant 0 : index
    %c0_11 = arith.constant 0 : index
    %11 = vector.load %arg1[%c0_9, %c0_10, %c0_11] : memref<2x32x256xf32, #tpu.memory_space<vmem>>, vector<1x32x256xf32>
    %12 = vector.shape_cast %11 : vector<1x32x256xf32> to vector<32x256xf32>
    %13 = arith.truncf %12 : vector<32x256xf32> to vector<32x256xbf16>
    %cst = arith.constant dense<0.000000e+00> : vector<64x256xf32>
    %14 = tpu.matmul %0, %13, %cst {dimension_numbers = #tpu.dot_dimension_numbers<[1], [0], [0], [1], [0, 0, 1, 1], [], []>} : vector<64x32xbf16>, vector<32x256xbf16>, vector<64x256xf32> -> vector<64x256xf32>
    %15 = vector.broadcast %1 : vector<64x1xf32> to vector<64x256xf32>
    %16 = arith.addf %14, %15 : vector<64x256xf32>
    %cst_12 = arith.constant 5.000000e-01 : f32
    %17 = vector.broadcast %cst_12 : f32 to vector<64x256xf32>
    %18 = arith.mulf %17, %16 : vector<64x256xf32>
    %19 = math.tanh %18 : vector<64x256xf32>
    %cst_13 = arith.constant 5.000000e-01 : f32
    %20 = vector.broadcast %cst_13 : f32 to vector<64x256xf32>
    %21 = arith.mulf %20, %19 : vector<64x256xf32>
    %cst_14 = arith.constant 5.000000e-01 : f32
    %22 = vector.broadcast %cst_14 : f32 to vector<64x256xf32>
    %23 = arith.addf %21, %22 : vector<64x256xf32>
    %24 = arith.mulf %16, %23 : vector<64x256xf32>
    %c1_i32_15 = arith.constant 1 : i32
    %25 = tpu.dynamic_rotate %24 by %c1_i32_15 dim 1 : vector<64x256xf32>, i32 -> vector<64x256xf32>
    %cst_16 = arith.constant 0.000000e+00 : f32
    %26 = vector.broadcast %cst_16 : f32 to vector<64x256xf32>
    %27 = arith.select %8, %25, %26 : vector<64x256xi1>, vector<64x256xf32>
    %28 = vector.extract_strided_slice %2 {offsets = [0, 0], sizes = [64, 1], strides = [1, 1]} : vector<64x3xf32> to vector<64x1xf32>
    %29 = vector.broadcast %28 : vector<64x1xf32> to vector<64x256xf32>
    %30 = arith.mulf %29, %27 : vector<64x256xf32>
    %31 = vector.extract_strided_slice %2 {offsets = [0, 1], sizes = [64, 1], strides = [1, 1]} : vector<64x3xf32> to vector<64x1xf32>
    %32 = vector.broadcast %31 : vector<64x1xf32> to vector<64x256xf32>
    %33 = arith.mulf %32, %24 : vector<64x256xf32>
    %34 = arith.addf %30, %33 : vector<64x256xf32>
    %c255_i32_17 = arith.constant 255 : i32
    %35 = tpu.dynamic_rotate %24 by %c255_i32_17 dim 1 : vector<64x256xf32>, i32 -> vector<64x256xf32>
    %cst_18 = arith.constant 0.000000e+00 : f32
    %36 = vector.broadcast %cst_18 : f32 to vector<64x256xf32>
    %37 = arith.select %10, %35, %36 : vector<64x256xi1>, vector<64x256xf32>
    %38 = vector.extract_strided_slice %2 {offsets = [0, 2], sizes = [64, 1], strides = [1, 1]} : vector<64x3xf32> to vector<64x1xf32>
    %39 = vector.broadcast %38 : vector<64x1xf32> to vector<64x256xf32>
    %40 = arith.mulf %39, %37 : vector<64x256xf32>
    %41 = arith.addf %34, %40 : vector<64x256xf32>
    %cst_19 = arith.constant dense<0.000000e+00> : vector<64x128xf32>
    %42 = tpu.matmul %41, %5, %cst_19 {dimension_numbers = #tpu.dot_dimension_numbers<[1], [0], [0], [1], [0, 0, 1, 1], [], []>} : vector<64x256xf32>, vector<256x128xf32>, vector<64x128xf32> -> vector<64x128xf32>
    %43 = vector.broadcast %3 : vector<64x1xf32> to vector<64x128xf32>
    %44 = arith.addf %42, %43 : vector<64x128xf32>
    %c0_20 = arith.constant 0 : index
    %c0_21 = arith.constant 0 : index
    %c0_22 = arith.constant 0 : index
    %45 = vector.load %arg7[%c0_20, %c0_21, %c0_22] : memref<2x64x128xf32, #tpu.memory_space<vmem>>, vector<1x64x128xf32>
    %46 = vector.shape_cast %45 : vector<1x64x128xf32> to vector<64x128xf32>
    %47 = vector.shape_cast %44 : vector<64x128xf32> to vector<1x64x128xf32>
    tpu.vector_store %arg7[%c0_20, %c0_21, %c0_22], %47 {strides = array<i32>} : memref<2x64x128xf32, #tpu.memory_space<vmem>>, vector<1x64x128xf32>,
    %c1 = arith.constant 1 : index
    %c0_23 = arith.constant 0 : index
    %c0_24 = arith.constant 0 : index
    %48 = vector.load %arg1[%c1, %c0_23, %c0_24] : memref<2x32x256xf32, #tpu.memory_space<vmem>>, vector<1x32x256xf32>
    %49 = vector.shape_cast %48 : vector<1x32x256xf32> to vector<32x256xf32>
    %50 = arith.truncf %49 : vector<32x256xf32> to vector<32x256xbf16>
    %cst_25 = arith.constant dense<0.000000e+00> : vector<64x256xf32>
    %51 = tpu.matmul %0, %50, %cst_25 {dimension_numbers = #tpu.dot_dimension_numbers<[1], [0], [0], [1], [0, 0, 1, 1], [], []>} : vector<64x32xbf16>, vector<32x256xbf16>, vector<64x256xf32> -> vector<64x256xf32>
    %52 = vector.broadcast %1 : vector<64x1xf32> to vector<64x256xf32>
    %53 = arith.addf %51, %52 : vector<64x256xf32>
    %cst_26 = arith.constant 5.000000e-01 : f32
    %54 = vector.broadcast %cst_26 : f32 to vector<64x256xf32>
    %55 = arith.mulf %54, %53 : vector<64x256xf32>
    %56 = math.tanh %55 : vector<64x256xf32>
    %cst_27 = arith.constant 5.000000e-01 : f32
    %57 = vector.broadcast %cst_27 : f32 to vector<64x256xf32>
    %58 = arith.mulf %57, %56 : vector<64x256xf32>
    %cst_28 = arith.constant 5.000000e-01 : f32
    %59 = vector.broadcast %cst_28 : f32 to vector<64x256xf32>
    %60 = arith.addf %58, %59 : vector<64x256xf32>
    %61 = arith.mulf %53, %60 : vector<64x256xf32>
    %c1_i32_29 = arith.constant 1 : i32
    %62 = tpu.dynamic_rotate %61 by %c1_i32_29 dim 1 : vector<64x256xf32>, i32 -> vector<64x256xf32>
    %cst_30 = arith.constant 0.000000e+00 : f32
    %63 = vector.broadcast %cst_30 : f32 to vector<64x256xf32>
    %64 = arith.select %8, %62, %63 : vector<64x256xi1>, vector<64x256xf32>
    %65 = vector.extract_strided_slice %2 {offsets = [0, 0], sizes = [64, 1], strides = [1, 1]} : vector<64x3xf32> to vector<64x1xf32>
    %66 = vector.broadcast %65 : vector<64x1xf32> to vector<64x256xf32>
    %67 = arith.mulf %66, %64 : vector<64x256xf32>
    %68 = vector.extract_strided_slice %2 {offsets = [0, 1], sizes = [64, 1], strides = [1, 1]} : vector<64x3xf32> to vector<64x1xf32>
    %69 = vector.broadcast %68 : vector<64x1xf32> to vector<64x256xf32>
    %70 = arith.mulf %69, %61 : vector<64x256xf32>
    %71 = arith.addf %67, %70 : vector<64x256xf32>
    %c255_i32_31 = arith.constant 255 : i32
    %72 = tpu.dynamic_rotate %61 by %c255_i32_31 dim 1 : vector<64x256xf32>, i32 -> vector<64x256xf32>
    %cst_32 = arith.constant 0.000000e+00 : f32
    %73 = vector.broadcast %cst_32 : f32 to vector<64x256xf32>
    %74 = arith.select %10, %72, %73 : vector<64x256xi1>, vector<64x256xf32>
    %75 = vector.extract_strided_slice %2 {offsets = [0, 2], sizes = [64, 1], strides = [1, 1]} : vector<64x3xf32> to vector<64x1xf32>
    %76 = vector.broadcast %75 : vector<64x1xf32> to vector<64x256xf32>
    %77 = arith.mulf %76, %74 : vector<64x256xf32>
    %78 = arith.addf %71, %77 : vector<64x256xf32>
    %cst_33 = arith.constant dense<0.000000e+00> : vector<64x128xf32>
    %79 = tpu.matmul %78, %5, %cst_33 {dimension_numbers = #tpu.dot_dimension_numbers<[1], [0], [0], [1], [0, 0, 1, 1], [], []>} : vector<64x256xf32>, vector<256x128xf32>, vector<64x128xf32> -> vector<64x128xf32>
    %80 = vector.broadcast %3 : vector<64x1xf32> to vector<64x128xf32>
    %81 = arith.addf %79, %80 : vector<64x128xf32>
    %c1_34 = arith.constant 1 : index
    %c0_35 = arith.constant 0 : index
    %c0_36 = arith.constant 0 : index
    %82 = vector.load %arg7[%c1_34, %c0_35, %c0_36] : memref<2x64x128xf32, #tpu.memory_space<vmem>>, vector<1x64x128xf32>
    %83 = vector.shape_cast %82 : vector<1x64x128xf32> to vector<64x128xf32>
    %84 = vector.shape_cast %81 : vector<64x128xf32> to vector<1x64x128xf32>
    tpu.vector_store %arg7[%c1_34, %c0_35, %c0_36], %84 {strides = array<i32>} : memref<2x64x128xf32, #tpu.memory_space<vmem>>, vector<1x64x128xf32>,
    return
  }
  func.func @transform_0(%arg0: i32) -> (i32, i32, i32) {
    %c0_i32 = arith.constant 0 : i32
    %c0_i32_0 = arith.constant 0 : i32
    %c0_i32_1 = arith.constant 0 : i32
    return %arg0, %c0_i32, %c0_i32_0 : i32, i32, i32
  }
  func.func @transform_1(%arg0: i32) -> (i32, i32) {
    %c0_i32 = arith.constant 0 : i32
    %c0_i32_0 = arith.constant 0 : i32
    %c0_i32_1 = arith.constant 0 : i32
    return %c0_i32, %c0_i32_0 : i32, i32
  }
  func.func @transform_2(%arg0: i32) -> (i32, i32) {
    %c0_i32 = arith.constant 0 : i32
    %c0_i32_0 = arith.constant 0 : i32
    %c0_i32_1 = arith.constant 0 : i32
    return %c0_i32, %c0_i32_0 : i32, i32
  }
  func.func @transform_3(%arg0: i32) -> (i32, i32) {
    %c0_i32 = arith.constant 0 : i32
    %c0_i32_0 = arith.constant 0 : i32
    %c0_i32_1 = arith.constant 0 : i32
    return %c0_i32, %c0_i32_0 : i32, i32
  }
  func.func @transform_4(%arg0: i32) -> (i32, i32) {
    %c0_i32 = arith.constant 0 : i32
    %c0_i32_0 = arith.constant 0 : i32
    %c0_i32_1 = arith.constant 0 : i32
    return %c0_i32, %c0_i32_0 : i32, i32
  }
  func.func @transform_5(%arg0: i32) -> (i32, i32) {
    %c0_i32 = arith.constant 0 : i32
    %c0_i32_0 = arith.constant 0 : i32
    %c0_i32_1 = arith.constant 0 : i32
    return %c0_i32, %c0_i32_0 : i32, i32
  }
  func.func @transform_6(%arg0: i32) -> (i32, i32, i32) {
    %c0_i32 = arith.constant 0 : i32
    %c0_i32_0 = arith.constant 0 : i32
    %c0_i32_1 = arith.constant 0 : i32
    return %arg0, %c0_i32, %c0_i32_0 : i32, i32, i32
  }
}

</mosaic_0001>

<llo_original>
// kernel: tpu_custom_call.1
$region0: #{tpu_custom_call.1}
  #allocation0 [shape = 'u32[]', space=smem, size = 0x4, offset = 0x4, fixed_abs, tag = 'smem constant byte address 0x4 - core index']
  #allocation1 [shape = 'u32[144,128]{1,0:T(1,128)}', space=vmem, size = 0x12000, scoped, tag = 'internal scratch']
  %s0 = inlined_call_operand.vmem [shape: f32[2,32,256], index: 0, kind: input, shape index: {}]
  %s1 = inlined_call_operand.vmem [shape: bf16[64,32], index: 1, kind: input, shape index: {}]
  %s2 = inlined_call_operand.vmem [shape: f32[64,1], index: 2, kind: input, shape index: {}]
  %s3 = inlined_call_operand.vmem [shape: f32[64,3], index: 3, kind: input, shape index: {}]
  %s4 = inlined_call_operand.vmem [shape: f32[64,1], index: 4, kind: input, shape index: {}]
  %s5 = inlined_call_operand.hbm [shape: bf16[256,128], index: 5, kind: input, shape index: {}]
  %s6 = inlined_call_operand.hbm [shape: f32[2,64,128], index: 6, kind: output, shape index: {}]
  %s7 = sld [smem:[#allocation0]]
  $region38: #{tpu_custom_call.1} parent=0
    _
  %s9 = ssub.s32 1, %s7
  %s10 = scalar_select 0, %s9, %s7
  $region1: #{tpu_custom_call.1} parent=0
    #allocation2 [shape = 'u8[65536]{0}', space=vmem, size = 0x10000, scoped, tag = 'input window, operand 5, single buffered']
    #allocation3 [shape = 's32[1]{0}', space=sflag, size = 0x4, scoped, tag = 'scoped memory for tpu_custom_call.1']
    #allocation4 [shape = 's32[1]{0}', space=sflag, size = 0x4, scoped, tag = 'scoped memory for tpu_custom_call.1']
    #allocation5 [shape = 'u8[65536]{0}', space=vmem, size = 0x10000, scoped, tag = 'output window, operand 0, single buffered']
    %11 = vsyncpa [#allocation3], 0
    %12 = vsyncpa [#allocation4], 0
    // Predicated region
    $region2: #{tpu_custom_call.1} parent=1 // pred_check
      _
    $region3: #{tpu_custom_call.1} parent=1 // pred_check_branch
      %14 = sbr.rel (0) target = $region5
    $region4: #{tpu_custom_call.1} parent=1 // pred_region
      _
    $region5: #{tpu_custom_call.1} parent=1 // pred_fallthru
      _
    // Predicated region
    $region6: #{tpu_custom_call.1} parent=1 // pred_check
      _
    $region7: #{tpu_custom_call.1} parent=1 // pred_check_branch
      %16 = sbr.rel (0) target = $region9
    $region8: #{tpu_custom_call.1} parent=1 // pred_region
      _
    $region9: #{tpu_custom_call.1} parent=1 // pred_fallthru
      _
    // Predicated region
    $region10: #{tpu_custom_call.1} parent=1 // pred_check
      _
    $region11: #{tpu_custom_call.1} parent=1 // pred_check_branch
      %18 = sbr.rel (0) target = $region13
    $region12: #{tpu_custom_call.1} parent=1 // pred_region
      _
    $region13: #{tpu_custom_call.1} parent=1 // pred_fallthru
      _
    // Predicated region
    $region14: #{tpu_custom_call.1} parent=1 // pred_check
      _
    $region15: #{tpu_custom_call.1} parent=1 // pred_check_branch
      %20 = sbr.rel (0) target = $region17
    $region16: #{tpu_custom_call.1} parent=1 // pred_region
      _
    $region17: #{tpu_custom_call.1} parent=1 // pred_fallthru
      _
    // Predicated region
    $region18: #{tpu_custom_call.1} parent=1 // pred_check
      _
    $region19: #{tpu_custom_call.1} parent=1 // pred_check_branch
      %22 = sbr.rel (0) target = $region21
    $region20: #{tpu_custom_call.1} parent=1 // pred_region
      _
    $region21: #{tpu_custom_call.1} parent=1 // pred_fallthru
      _
    // Predicated region
    $region22: #{tpu_custom_call.1} parent=1 // pred_check
      _
    $region23: #{tpu_custom_call.1} parent=1 // pred_check_branch
      %24 = sbr.rel (0) target = $region25
    $region24: #{tpu_custom_call.1} parent=1 // pred_region
      %s26 = ssub.s32 2048, 2048
      %27 = vsyncadd [#allocation3], %s26
      %s28 = sshll.u32 [#allocation2], 4
      %s29 = int_to_ptr.vmem [resolvable:$true] %s28
      %34 = dma.hbm_to_vmem [thread:$0]  %s5, 2048, %s29, [#allocation3], 64, 64, 4
    $region25: #{tpu_custom_call.1} parent=1 // pred_fallthru
      _
    // Predicated region
    $region26: #{tpu_custom_call.1} parent=1 // pred_check
      _
    $region27: #{tpu_custom_call.1} parent=1 // pred_check_branch
      %36 = sbr.rel (0) target = $region29
    $region28: #{tpu_custom_call.1} parent=1 // pred_region
      %37 = dma.done [#allocation3], 2048
    $region29: #{tpu_custom_call.1} parent=1 // pred_fallthru
      _
    %v39 = vld [vmem:[%s1] sm:$0xf]
    %v40 = vld [vmem:[%s1 + $0x4] sm:$0xf]
    %v41 = vld [vmem:[%s1 + $0x8] sm:$0xf]
    %v42 = vld [vmem:[%s1 + $0xc] sm:$0xf]
    %v43 = vld [vmem:[%s1 + $0x10] sm:$0xf]
    %v44 = vld [vmem:[%s1 + $0x14] sm:$0xf]
    %v45 = vld [vmem:[%s1 + $0x18] sm:$0xf]
    %v46 = vld [vmem:[%s1 + $0x1c] sm:$0xf]
    %v47 = vld [vmem:[%s2] sm:$0xff]
    %v48 = vld [vmem:[%s2 + $0x8] sm:$0xff]
    %v49 = vld [vmem:[%s2 + $0x10] sm:$0xff]
    %v50 = vld [vmem:[%s2 + $0x18] sm:$0xff]
    %v51 = vld [vmem:[%s2 + $0x20] sm:$0xff]
    %v52 = vld [vmem:[%s2 + $0x28] sm:$0xff]
    %v53 = vld [vmem:[%s2 + $0x30] sm:$0xff]
    %v54 = vld [vmem:[%s2 + $0x38] sm:$0xff]
    %v55 = vld [vmem:[%s3] sm:$0xff]
    %v56 = vld [vmem:[%s3 + $0x8] sm:$0xff]
    %v57 = vld [vmem:[%s3 + $0x10] sm:$0xff]
    %v58 = vld [vmem:[%s3 + $0x18] sm:$0xff]
    %v59 = vld [vmem:[%s3 + $0x20] sm:$0xff]
    %v60 = vld [vmem:[%s3 + $0x28] sm:$0xff]
    %v61 = vld [vmem:[%s3 + $0x30] sm:$0xff]
    %v62 = vld [vmem:[%s3 + $0x38] sm:$0xff]
    %v63 = vld [vmem:[%s4] sm:$0xff]
    %v64 = vld [vmem:[%s4 + $0x8] sm:$0xff]
    %v65 = vld [vmem:[%s4 + $0x10] sm:$0xff]
    %v66 = vld [vmem:[%s4 + $0x18] sm:$0xff]
    %v67 = vld [vmem:[%s4 + $0x20] sm:$0xff]
    %v68 = vld [vmem:[%s4 + $0x28] sm:$0xff]
    %v69 = vld [vmem:[%s4 + $0x30] sm:$0xff]
    %v70 = vld [vmem:[%s4 + $0x38] sm:$0xff]
    %v71 = vld [vmem:[#allocation2] sm:$0xf]
    %v72 = vld [vmem:[#allocation2 + $0x4] sm:$0xf]
    %v73 = vld [vmem:[#allocation2 + $0x8] sm:$0xf]
    %v74 = vld [vmem:[#allocation2 + $0xc] sm:$0xf]
    %v75 = vld [vmem:[#allocation2 + $0x10] sm:$0xf]
    %v76 = vld [vmem:[#allocation2 + $0x14] sm:$0xf]
    %v77 = vld [vmem:[#allocation2 + $0x18] sm:$0xf]
    %v78 = vld [vmem:[#allocation2 + $0x1c] sm:$0xf]
    %v79 = vld [vmem:[#allocation2 + $0x20] sm:$0xf]
    %v80 = vld [vmem:[#allocation2 + $0x24] sm:$0xf]
    %v81 = vld [vmem:[#allocation2 + $0x28] sm:$0xf]
    %v82 = vld [vmem:[#allocation2 + $0x2c] sm:$0xf]
    %v83 = vld [vmem:[#allocation2 + $0x30] sm:$0xf]
    %v84 = vld [vmem:[#allocation2 + $0x34] sm:$0xf]
    %v85 = vld [vmem:[#allocation2 + $0x38] sm:$0xf]
    %v86 = vld [vmem:[#allocation2 + $0x3c] sm:$0xf]
    %v87 = vld [vmem:[#allocation2 + $0x40] sm:$0xf]
    %v88 = vld [vmem:[#allocation2 + $0x44] sm:$0xf]
    %v89 = vld [vmem:[#allocation2 + $0x48] sm:$0xf]
    %v90 = vld [vmem:[#allocation2 + $0x4c] sm:$0xf]
    %v91 = vld [vmem:[#allocation2 + $0x50] sm:$0xf]
    %v92 = vld [vmem:[#allocation2 + $0x54] sm:$0xf]
    %v93 = vld [vmem:[#allocation2 + $0x58] sm:$0xf]
    %v94 = vld [vmem:[#allocation2 + $0x5c] sm:$0xf]
    %v95 = vld [vmem:[#allocation2 + $0x60] sm:$0xf]
    %v96 = vld [vmem:[#allocation2 + $0x64] sm:$0xf]
    %v97 = vld [vmem:[#allocation2 + $0x68] sm:$0xf]
    %v98 = vld [vmem:[#allocation2 + $0x6c] sm:$0xf]
    %v99 = vld [vmem:[#allocation2 + $0x70] sm:$0xf]
    %v100 = vld [vmem:[#allocation2 + $0x74] sm:$0xf]
    %v101 = vld [vmem:[#allocation2 + $0x78] sm:$0xf]
    %v102 = vld [vmem:[#allocation2 + $0x7c] sm:$0xf]
    %v103 = vunpack.c.l.bf16 %v71
    %v104 = vunpack.c.l.bf16 %v72
    %v105 = vunpack.c.l.bf16 %v73
    %v106 = vunpack.c.l.bf16 %v74
    %v107 = vunpack.c.l.bf16 %v75
    %v108 = vunpack.c.l.bf16 %v76
    %v109 = vunpack.c.l.bf16 %v77
    %v110 = vunpack.c.l.bf16 %v78
    %v111 = vunpack.c.l.bf16 %v79
    %v112 = vunpack.c.l.bf16 %v80
    %v113 = vunpack.c.l.bf16 %v81
    %v114 = vunpack.c.l.bf16 %v82
    %v115 = vunpack.c.l.bf16 %v83
    %v116 = vunpack.c.l.bf16 %v84
    %v117 = vunpack.c.l.bf16 %v85
    %v118 = vunpack.c.l.bf16 %v86
    %v119 = vunpack.c.l.bf16 %v87
    %v120 = vunpack.c.l.bf16 %v88
    %v121 = vunpack.c.l.bf16 %v89
    %v122 = vunpack.c.l.bf16 %v90
    %v123 = vunpack.c.l.bf16 %v91
    %v124 = vunpack.c.l.bf16 %v92
    %v125 = vunpack.c.l.bf16 %v93
    %v126 = vunpack.c.l.bf16 %v94
    %v127 = vunpack.c.l.bf16 %v95
    %v128 = vunpack.c.l.bf16 %v96
    %v129 = vunpack.c.l.bf16 %v97
    %v130 = vunpack.c.l.bf16 %v98
    %v131 = vunpack.c.l.bf16 %v99
    %v132 = vunpack.c.l.bf16 %v100
    %v133 = vunpack.c.l.bf16 %v101
    %v134 = vunpack.c.l.bf16 %v102
    %v135 = vlaneseq
    %v136 = vand.u32 %v135, 127
    %v137 = vadd.s32 %v136, 128
    %vm138 = vcmp.ge.s32.totalorder %v136, 1
    %vm139 = vcmp.ge.s32.totalorder %v137, 1
    %vm140 = vcmp.lt.s32.totalorder %v136, 255
    %vm141 = vcmp.lt.s32.totalorder %v137, 255
    %v142 = vld [vmem:[%s0] sm:$0xff]
    %v143 = vld [vmem:[%s0 + $0x8] sm:$0xff]
    %v144 = vld [vmem:[%s0 + $0x10] sm:$0xff]
    %v145 = vld [vmem:[%s0 + $0x18] sm:$0xff]
    %v146 = vld [vmem:[%s0 + $0x20] sm:$0xff]
    %v147 = vld [vmem:[%s0 + $0x28] sm:$0xff]
    %v148 = vld [vmem:[%s0 + $0x30] sm:$0xff]
    %v149 = vld [vmem:[%s0 + $0x38] sm:$0xff]
    %v150 = vpack.c.bf16 %v144, %v142
    %v151 = vpack.c.bf16 %v145, %v143
    %v152 = vpack.c.bf16 %v148, %v146
    %v153 = vpack.c.bf16 %v149, %v147
    %155 = vset.pattern.permute.xlu0 0
    %156 = vperm.xlu0 %155, %v47
    %v157 = vpop.permute.xlu0 %156
    %160 = vset.pattern.permute.xlu0 0
    %161 = vperm.xlu0 %160, %v48
    %v162 = vpop.permute.xlu0 %161
    %165 = vset.pattern.permute.xlu0 0
    %166 = vperm.xlu0 %165, %v49
    %v167 = vpop.permute.xlu0 %166
    %170 = vset.pattern.permute.xlu0 0
    %171 = vperm.xlu0 %170, %v50
    %v172 = vpop.permute.xlu0 %171
    %175 = vset.pattern.permute.xlu0 0
    %176 = vperm.xlu0 %175, %v51
    %v177 = vpop.permute.xlu0 %176
    %180 = vset.pattern.permute.xlu0 0
    %181 = vperm.xlu0 %180, %v52
    %v182 = vpop.permute.xlu0 %181
    %185 = vset.pattern.permute.xlu0 0
    %186 = vperm.xlu0 %185, %v53
    %v187 = vpop.permute.xlu0 %186
    %190 = vset.pattern.permute.xlu0 0
    %191 = vperm.xlu0 %190, %v54
    %v192 = vpop.permute.xlu0 %191
    %v202 = vunpack.c.l.b16 %v39
    %v203 = vunpack.c.l.b16 %v40
    %v204 = vunpack.c.l.b16 %v41
    %v205 = vunpack.c.l.b16 %v42
    %v206 = vunpack.c.l.b16 %v43
    %v207 = vunpack.c.l.b16 %v44
    %v208 = vunpack.c.l.b16 %v45
    %v209 = vunpack.c.l.b16 %v46
    %v210 = vpack.c.b16 %v203, %v202
    %v211 = vpack.c.b16 %v205, %v204
    %v212 = vpack.c.b16 %v207, %v206
    %v213 = vpack.c.b16 %v209, %v208
    %vm214 = vcmask 261120
    %v216 = vsel %vm214, %v210, 0
    %v219 = vsel %vm214, %v211, 0
    %v222 = vsel %vm214, %v212, 0
    %v225 = vsel %vm214, %v213, 0
    %227 = vmatprep.subr.bf16.mxu0 0
    %228 = vmatpush1.bf16.msra.mxu0 0
    %229 = vmatprep.subr.bf16.mxu0 0
    %230 = vmatpush1.bf16.msra.mxu0 0
    %231 = vmatprep.subr.bf16.mxu0 0
    %232 = vmatpush1.bf16.msra.mxu0 0
    %233 = vmatprep.subr.bf16.mxu0 0
    %234 = vmatpush1.bf16.msra.mxu0 0
    %235 = vmatprep.subr.bf16.mxu0 0
    %236 = vmatpush1.bf16.msra.mxu0 0
    %237 = vmatprep.subr.bf16.mxu0 0
    %238 = vmatpush1.bf16.msra.mxu0 0
    %239 = vmatprep.subr.bf16.mxu0 %v153
    %240 = vmatpush1.bf16.msra.mxu0 %v152
    %241 = vmatprep.subr.bf16.mxu0 %v151
    %242 = vmatpush1.bf16.msra.mxu0 %v150
    %243 = vmatprep.subr.bf16.mxu0 0
    %244 = vmatpush2.bf16.msra.mxu0 0
    %245 = vmatprep.subr.bf16.mxu0 0
    %246 = vmatpush2.bf16.msra.mxu0 0
    %247 = vmatprep.subr.bf16.mxu0 0
    %248 = vmatpush2.bf16.msra.mxu0 0
    %249 = vmatprep.subr.bf16.mxu0 0
    %250 = vmatpush2.bf16.msra.mxu0 0
    %251 = vmatprep.subr.bf16.mxu0 0
    %252 = vmatpush2.bf16.msra.mxu0 0
    %253 = vmatprep.subr.bf16.mxu0 0
    %254 = vmatpush2.bf16.msra.mxu0 0
    %255 = vmatprep.subr.bf16.mxu0 0
    %256 = vmatpush2.bf16.msra.mxu0 0
    %257 = vmatprep.subr.bf16.mxu0 0
    %258 = vmatpush2.bf16.msra.mxu0 0
    %259 = vmatprep.mubr.bf16.mxu0 0
    %260 = vmatmul.mubr.bf16.gmra.mxu0 %v216
    %v261 = vpop.f32.mrf.mxu0
    %v262 = vadd.f32 %v157, %v261
    %v263 = vpop.f32.mrf.mxu0
    %v264 = vadd.f32 %v157, %v263
    %v265 = vpop.f32.mrf.mxu0
    %v266 = vadd.f32 %v162, %v265
    %v267 = vpop.f32.mrf.mxu0
    %v268 = vadd.f32 %v162, %v267
    %269 = vmatprep.mubr.bf16.mxu0 0
    %270 = vmatmul.mubr.bf16.gmra.mxu0 %v219
    %v271 = vpop.f32.mrf.mxu0
    %v272 = vadd.f32 %v167, %v271
    %v273 = vpop.f32.mrf.mxu0
    %v274 = vadd.f32 %v167, %v273
    %v275 = vpop.f32.mrf.mxu0
    %v276 = vadd.f32 %v172, %v275
    %v277 = vpop.f32.mrf.mxu0
    %v278 = vadd.f32 %v172, %v277
    %279 = vmatprep.mubr.bf16.mxu0 0
    %280 = vmatmul.mubr.bf16.gmra.mxu0 %v222
    %v281 = vpop.f32.mrf.mxu0
    %v282 = vadd.f32 %v177, %v281
    %v283 = vpop.f32.mrf.mxu0
    %v284 = vadd.f32 %v177, %v283
    %v285 = vpop.f32.mrf.mxu0
    %v286 = vadd.f32 %v182, %v285
    %v287 = vpop.f32.mrf.mxu0
    %v288 = vadd.f32 %v182, %v287
    %289 = vmatprep.mubr.bf16.mxu0 0
    %290 = vmatmul.mubr.bf16.gmra.mxu0 %v225
    %v291 = vpop.f32.mrf.mxu0
    %v292 = vadd.f32 %v187, %v291
    %v293 = vpop.f32.mrf.mxu0
    %v294 = vadd.f32 %v187, %v293
    %v295 = vpop.f32.mrf.mxu0
    %v296 = vadd.f32 %v192, %v295
    %v297 = vpop.f32.mrf.mxu0
    %v298 = vadd.f32 %v192, %v297
    %299 = vdwg.mxu0
    %v300 = vmul.f32 %v262, 0.5
    %v301 = vmul.f32 %v264, 0.5
    %v302 = vmul.f32 %v266, 0.5
    %v303 = vmul.f32 %v268, 0.5
    %v304 = vmul.f32 %v272, 0.5
    %v305 = vmul.f32 %v274, 0.5
    %v306 = vmul.f32 %v276, 0.5
    %v307 = vmul.f32 %v278, 0.5
    %v308 = vmul.f32 %v282, 0.5
    %v309 = vmul.f32 %v284, 0.5
    %v310 = vmul.f32 %v286, 0.5
    %v311 = vmul.f32 %v288, 0.5
    %v312 = vmul.f32 %v292, 0.5
    %v313 = vmul.f32 %v294, 0.5
    %v314 = vmul.f32 %v296, 0.5
    %v315 = vmul.f32 %v298, 0.5
    %v316 = vtanh.pop %v300
    %v317 = vtanh.pop %v301
    %v318 = vtanh.pop %v302
    %v319 = vtanh.pop %v303
    %v320 = vtanh.pop %v304
    %v321 = vtanh.pop %v305
    %v322 = vtanh.pop %v306
    %v323 = vtanh.pop %v307
    %v324 = vtanh.pop %v308
    %v325 = vtanh.pop %v309
    %v326 = vtanh.pop %v310
    %v327 = vtanh.pop %v311
    %v328 = vtanh.pop %v312
    %v329 = vtanh.pop %v313
    %v330 = vtanh.pop %v314
    %v331 = vtanh.pop %v315
    %v332 = vmul.f32 %v316, 0.5
    %v333 = vmul.f32 %v317, 0.5
    %v334 = vmul.f32 %v318, 0.5
    %v335 = vmul.f32 %v319, 0.5
    %v336 = vmul.f32 %v320, 0.5
    %v337 = vmul.f32 %v321, 0.5
    %v338 = vmul.f32 %v322, 0.5
    %v339 = vmul.f32 %v323, 0.5
    %v340 = vmul.f32 %v324, 0.5
    %v341 = vmul.f32 %v325, 0.5
    %v342 = vmul.f32 %v326, 0.5
    %v343 = vmul.f32 %v327, 0.5
    %v344 = vmul.f32 %v328, 0.5
    %v345 = vmul.f32 %v329, 0.5
    %v346 = vmul.f32 %v330, 0.5
    %v347 = vmul.f32 %v331, 0.5
    %v348 = vadd.f32 %v332, 0.5
    %v349 = vadd.f32 %v333, 0.5
    %v350 = vadd.f32 %v334, 0.5
    %v351 = vadd.f32 %v335, 0.5
    %v352 = vadd.f32 %v336, 0.5
    %v353 = vadd.f32 %v337, 0.5
    %v354 = vadd.f32 %v338, 0.5
    %v355 = vadd.f32 %v339, 0.5
    %v356 = vadd.f32 %v340, 0.5
    %v357 = vadd.f32 %v341, 0.5
    %v358 = vadd.f32 %v342, 0.5
    %v359 = vadd.f32 %v343, 0.5
    %v360 = vadd.f32 %v344, 0.5
    %v361 = vadd.f32 %v345, 0.5
    %v362 = vadd.f32 %v346, 0.5
    %v363 = vadd.f32 %v347, 0.5
    %v364 = vmul.f32 %v262, %v348
    %v365 = vmul.f32 %v264, %v349
    %v366 = vmul.f32 %v266, %v350
    %v367 = vmul.f32 %v268, %v351
    %v368 = vmul.f32 %v272, %v352
    %v369 = vmul.f32 %v274, %v353
    %v370 = vmul.f32 %v276, %v354
    %v371 = vmul.f32 %v278, %v355
    %v372 = vmul.f32 %v282, %v356
    %v373 = vmul.f32 %v284, %v357
    %v374 = vmul.f32 %v286, %v358
    %v375 = vmul.f32 %v288, %v359
    %v376 = vmul.f32 %v292, %v360
    %v377 = vmul.f32 %v294, %v361
    %v378 = vmul.f32 %v296, %v362
    %v379 = vmul.f32 %v298, %v363
    %380 = vrot.lane.b32.xlu0 %v364, 1
    %v381 = vpop.permute.xlu0 %380
    %382 = vrot.lane.b32.xlu0 %v366, 1
    %v383 = vpop.permute.xlu0 %382
    %384 = vrot.lane.b32.xlu0 %v368, 1
    %v385 = vpop.permute.xlu0 %384
    %386 = vrot.lane.b32.xlu0 %v370, 1
    %v387 = vpop.permute.xlu0 %386
    %388 = vrot.lane.b32.xlu0 %v372, 1
    %v389 = vpop.permute.xlu0 %388
    %390 = vrot.lane.b32.xlu0 %v374, 1
    %v391 = vpop.permute.xlu0 %390
    %392 = vrot.lane.b32.xlu0 %v376, 1
    %v393 = vpop.permute.xlu0 %392
    %394 = vrot.lane.b32.xlu0 %v378, 1
    %v395 = vpop.permute.xlu0 %394
    %396 = vrot.lane.b32.xlu0 %v365, 1
    %v397 = vpop.permute.xlu0 %396
    %398 = vrot.lane.b32.xlu0 %v367, 1
    %v399 = vpop.permute.xlu0 %398
    %400 = vrot.lane.b32.xlu0 %v369, 1
    %v401 = vpop.permute.xlu0 %400
    %402 = vrot.lane.b32.xlu0 %v371, 1
    %v403 = vpop.permute.xlu0 %402
    %404 = vrot.lane.b32.xlu0 %v373, 1
    %v405 = vpop.permute.xlu0 %404
    %406 = vrot.lane.b32.xlu0 %v375, 1
    %v407 = vpop.permute.xlu0 %406
    %408 = vrot.lane.b32.xlu0 %v377, 1
    %v409 = vpop.permute.xlu0 %408
    %410 = vrot.lane.b32.xlu0 %v379, 1
    %v411 = vpop.permute.xlu0 %410
    %vm412 = vcmp.lt.s32.totalorder %v136, 1
    %v413 = vsel %vm412, %v381, %v397
    %v414 = vsel %vm412, %v383, %v399
    %v415 = vsel %vm412, %v385, %v401
    %v416 = vsel %vm412, %v387, %v403
    %v417 = vsel %vm412, %v389, %v405
    %v418 = vsel %vm412, %v391, %v407
    %v419 = vsel %vm412, %v393, %v409
    %v420 = vsel %vm412, %v395, %v411
    %v421 = vsel %vm412, %v397, %v381
    %v422 = vsel %vm412, %v399, %v383
    %v423 = vsel %vm412, %v401, %v385
    %v424 = vsel %vm412, %v403, %v387
    %v425 = vsel %vm412, %v405, %v389
    %v426 = vsel %vm412, %v407, %v391
    %v427 = vsel %vm412, %v409, %v393
    %v428 = vsel %vm412, %v411, %v395
    %v429 = vsel %vm138, %v421, 0.0
    %v430 = vsel %vm139, %v413, 0.0
    %v431 = vsel %vm138, %v422, 0.0
    %v432 = vsel %vm139, %v414, 0.0
    %v433 = vsel %vm138, %v423, 0.0
    %v434 = vsel %vm139, %v415, 0.0
    %v435 = vsel %vm138, %v424, 0.0
    %v436 = vsel %vm139, %v416, 0.0
    %v437 = vsel %vm138, %v425, 0.0
    %v438 = vsel %vm139, %v417, 0.0
    %v439 = vsel %vm138, %v426, 0.0
    %v440 = vsel %vm139, %v418, 0.0
    %v441 = vsel %vm138, %v427, 0.0
    %v442 = vsel %vm139, %v419, 0.0
    %v443 = vsel %vm138, %v428, 0.0
    %v444 = vsel %vm139, %v420, 0.0
    %446 = vset.pattern.permute.xlu0 0
    %447 = vperm.xlu0 %446, %v55
    %v448 = vpop.permute.xlu0 %447
    %451 = vset.pattern.permute.xlu0 0
    %452 = vperm.xlu0 %451, %v56
    %v453 = vpop.permute.xlu0 %452
    %456 = vset.pattern.permute.xlu0 0
    %457 = vperm.xlu0 %456, %v57
    %v458 = vpop.permute.xlu0 %457
    %461 = vset.pattern.permute.xlu0 0
    %462 = vperm.xlu0 %461, %v58
    %v463 = vpop.permute.xlu0 %462
    %466 = vset.pattern.permute.xlu0 0
    %467 = vperm.xlu0 %466, %v59
    %v468 = vpop.permute.xlu0 %467
    %471 = vset.pattern.permute.xlu0 0
    %472 = vperm.xlu0 %471, %v60
    %v473 = vpop.permute.xlu0 %472
    %476 = vset.pattern.permute.xlu0 0
    %477 = vperm.xlu0 %476, %v61
    %v478 = vpop.permute.xlu0 %477
    %481 = vset.pattern.permute.xlu0 0
    %482 = vperm.xlu0 %481, %v62
    %v483 = vpop.permute.xlu0 %482
    %v485 = vmul.f32 %v448, %v429
    %v486 = vmul.f32 %v448, %v430
    %v487 = vmul.f32 %v453, %v431
    %v488 = vmul.f32 %v453, %v432
    %v489 = vmul.f32 %v458, %v433
    %v490 = vmul.f32 %v458, %v434
    %v491 = vmul.f32 %v463, %v435
    %v492 = vmul.f32 %v463, %v436
    %v493 = vmul.f32 %v468, %v437
    %v494 = vmul.f32 %v468, %v438
    %v495 = vmul.f32 %v473, %v439
    %v496 = vmul.f32 %v473, %v440
    %v497 = vmul.f32 %v478, %v441
    %v498 = vmul.f32 %v478, %v442
    %v499 = vmul.f32 %v483, %v443
    %v500 = vmul.f32 %v483, %v444
    %501 = vset.pattern.permute.xlu0 1
    %502 = vperm.xlu0 %501, %v55
    %v503 = vpop.permute.xlu0 %502
    %505 = vset.pattern.permute.xlu0 1
    %506 = vperm.xlu0 %505, %v56
    %v507 = vpop.permute.xlu0 %506
    %509 = vset.pattern.permute.xlu0 1
    %510 = vperm.xlu0 %509, %v57
    %v511 = vpop.permute.xlu0 %510
    %513 = vset.pattern.permute.xlu0 1
    %514 = vperm.xlu0 %513, %v58
    %v515 = vpop.permute.xlu0 %514
    %517 = vset.pattern.permute.xlu0 1
    %518 = vperm.xlu0 %517, %v59
    %v519 = vpop.permute.xlu0 %518
    %521 = vset.pattern.permute.xlu0 1
    %522 = vperm.xlu0 %521, %v60
    %v523 = vpop.permute.xlu0 %522
    %525 = vset.pattern.permute.xlu0 1
    %526 = vperm.xlu0 %525, %v61
    %v527 = vpop.permute.xlu0 %526
    %529 = vset.pattern.permute.xlu0 1
    %530 = vperm.xlu0 %529, %v62
    %v531 = vpop.permute.xlu0 %530
    %v533 = vmul.f32 %v503, %v364
    %v534 = vmul.f32 %v503, %v365
    %v535 = vmul.f32 %v507, %v366
    %v536 = vmul.f32 %v507, %v367
    %v537 = vmul.f32 %v511, %v368
    %v538 = vmul.f32 %v511, %v369
    %v539 = vmul.f32 %v515, %v370
    %v540 = vmul.f32 %v515, %v371
    %v541 = vmul.f32 %v519, %v372
    %v542 = vmul.f32 %v519, %v373
    %v543 = vmul.f32 %v523, %v374
    %v544 = vmul.f32 %v523, %v375
    %v545 = vmul.f32 %v527, %v376
    %v546 = vmul.f32 %v527, %v377
    %v547 = vmul.f32 %v531, %v378
    %v548 = vmul.f32 %v531, %v379
    %v549 = vadd.f32 %v485, %v533
    %v550 = vadd.f32 %v486, %v534
    %v551 = vadd.f32 %v487, %v535
    %v552 = vadd.f32 %v488, %v536
    %v553 = vadd.f32 %v489, %v537
    %v554 = vadd.f32 %v490, %v538
    %v555 = vadd.f32 %v491, %v539
    %v556 = vadd.f32 %v492, %v540
    %v557 = vadd.f32 %v493, %v541
    %v558 = vadd.f32 %v494, %v542
    %v559 = vadd.f32 %v495, %v543
    %v560 = vadd.f32 %v496, %v544
    %v561 = vadd.f32 %v497, %v545
    %v562 = vadd.f32 %v498, %v546
    %v563 = vadd.f32 %v499, %v547
    %v564 = vadd.f32 %v500, %v548
    %565 = vrot.lane.b32.xlu0 %v364, 127
    %v566 = vpop.permute.xlu0 %565
    %567 = vrot.lane.b32.xlu0 %v366, 127
    %v568 = vpop.permute.xlu0 %567
    %569 = vrot.lane.b32.xlu0 %v368, 127
    %v570 = vpop.permute.xlu0 %569
    %571 = vrot.lane.b32.xlu0 %v370, 127
    %v572 = vpop.permute.xlu0 %571
    %573 = vrot.lane.b32.xlu0 %v372, 127
    %v574 = vpop.permute.xlu0 %573
    %575 = vrot.lane.b32.xlu0 %v374, 127
    %v576 = vpop.permute.xlu0 %575
    %577 = vrot.lane.b32.xlu0 %v376, 127
    %v578 = vpop.permute.xlu0 %577
    %579 = vrot.lane.b32.xlu0 %v378, 127
    %v580 = vpop.permute.xlu0 %579
    %581 = vrot.lane.b32.xlu0 %v365, 127
    %v582 = vpop.permute.xlu0 %581
    %583 = vrot.lane.b32.xlu0 %v367, 127
    %v584 = vpop.permute.xlu0 %583
    %585 = vrot.lane.b32.xlu0 %v369, 127
    %v586 = vpop.permute.xlu0 %585
    %587 = vrot.lane.b32.xlu0 %v371, 127
    %v588 = vpop.permute.xlu0 %587
    %589 = vrot.lane.b32.xlu0 %v373, 127
    %v590 = vpop.permute.xlu0 %589
    %591 = vrot.lane.b32.xlu0 %v375, 127
    %v592 = vpop.permute.xlu0 %591
    %593 = vrot.lane.b32.xlu0 %v377, 127
    %v594 = vpop.permute.xlu0 %593
    %595 = vrot.lane.b32.xlu0 %v379, 127
    %v596 = vpop.permute.xlu0 %595
    %vm597 = vcmp.lt.s32.totalorder %v136, 127
    %v598 = vsel %vm597, %v566, %v582
    %v599 = vsel %vm597, %v568, %v584
    %v600 = vsel %vm597, %v570, %v586
    %v601 = vsel %vm597, %v572, %v588
    %v602 = vsel %vm597, %v574, %v590
    %v603 = vsel %vm597, %v576, %v592
    %v604 = vsel %vm597, %v578, %v594
    %v605 = vsel %vm597, %v580, %v596
    %v606 = vsel %vm597, %v582, %v566
    %v607 = vsel %vm597, %v584, %v568
    %v608 = vsel %vm597, %v586, %v570
    %v609 = vsel %vm597, %v588, %v572
    %v610 = vsel %vm597, %v590, %v574
    %v611 = vsel %vm597, %v592, %v576
    %v612 = vsel %vm597, %v594, %v578
    %v613 = vsel %vm597, %v596, %v580
    %v614 = vsel %vm140, %v598, 0.0
    %v615 = vsel %vm141, %v606, 0.0
    %v616 = vsel %vm140, %v599, 0.0
    %v617 = vsel %vm141, %v607, 0.0
    %v618 = vsel %vm140, %v600, 0.0
    %v619 = vsel %vm141, %v608, 0.0
    %v620 = vsel %vm140, %v601, 0.0
    %v621 = vsel %vm141, %v609, 0.0
    %v622 = vsel %vm140, %v602, 0.0
    %v623 = vsel %vm141, %v610, 0.0
    %v624 = vsel %vm140, %v603, 0.0
    %v625 = vsel %vm141, %v611, 0.0
    %v626 = vsel %vm140, %v604, 0.0
    %v627 = vsel %vm141, %v612, 0.0
    %v628 = vsel %vm140, %v605, 0.0
    %v629 = vsel %vm141, %v613, 0.0
    %630 = vset.pattern.permute.xlu0 2
    %631 = vperm.xlu0 %630, %v55
    %v632 = vpop.permute.xlu0 %631
    %634 = vset.pattern.permute.xlu0 2
    %635 = vperm.xlu0 %634, %v56
    %v636 = vpop.permute.xlu0 %635
    %638 = vset.pattern.permute.xlu0 2
    %639 = vperm.xlu0 %638, %v57
    %v640 = vpop.permute.xlu0 %639
    %642 = vset.pattern.permute.xlu0 2
    %643 = vperm.xlu0 %642, %v58
    %v644 = vpop.permute.xlu0 %643
    %646 = vset.pattern.permute.xlu0 2
    %647 = vperm.xlu0 %646, %v59
    %v648 = vpop.permute.xlu0 %647
    %650 = vset.pattern.permute.xlu0 2
    %651 = vperm.xlu0 %650, %v60
    %v652 = vpop.permute.xlu0 %651
    %654 = vset.pattern.permute.xlu0 2
    %655 = vperm.xlu0 %654, %v61
    %v656 = vpop.permute.xlu0 %655
    %658 = vset.pattern.permute.xlu0 2
    %659 = vperm.xlu0 %658, %v62
    %v660 = vpop.permute.xlu0 %659
    %v662 = vmul.f32 %v632, %v614
    %v663 = vmul.f32 %v632, %v615
    %v664 = vmul.f32 %v636, %v616
    %v665 = vmul.f32 %v636, %v617
    %v666 = vmul.f32 %v640, %v618
    %v667 = vmul.f32 %v640, %v619
    %v668 = vmul.f32 %v644, %v620
    %v669 = vmul.f32 %v644, %v621
    %v670 = vmul.f32 %v648, %v622
    %v671 = vmul.f32 %v648, %v623
    %v672 = vmul.f32 %v652, %v624
    %v673 = vmul.f32 %v652, %v625
    %v674 = vmul.f32 %v656, %v626
    %v675 = vmul.f32 %v656, %v627
    %v676 = vmul.f32 %v660, %v628
    %v677 = vmul.f32 %v660, %v629
    %v678 = vadd.f32 %v549, %v662
    %v679 = vadd.f32 %v550, %v663
    %v680 = vadd.f32 %v551, %v664
    %v681 = vadd.f32 %v552, %v665
    %v682 = vadd.f32 %v553, %v666
    %v683 = vadd.f32 %v554, %v667
    %v684 = vadd.f32 %v555, %v668
    %v685 = vadd.f32 %v556, %v669
    %v686 = vadd.f32 %v557, %v670
    %v687 = vadd.f32 %v558, %v671
    %v688 = vadd.f32 %v559, %v672
    %v689 = vadd.f32 %v560, %v673
    %v690 = vadd.f32 %v561, %v674
    %v691 = vadd.f32 %v562, %v675
    %v692 = vadd.f32 %v563, %v676
    %v693 = vadd.f32 %v564, %v677
    %695 = vset.pattern.permute.xlu0 0
    %696 = vperm.xlu0 %695, %v63
    %v697 = vpop.permute.xlu0 %696
    %700 = vset.pattern.permute.xlu0 0
    %701 = vperm.xlu0 %700, %v64
    %v702 = vpop.permute.xlu0 %701
    %705 = vset.pattern.permute.xlu0 0
    %706 = vperm.xlu0 %705, %v65
    %v707 = vpop.permute.xlu0 %706
    %710 = vset.pattern.permute.xlu0 0
    %711 = vperm.xlu0 %710, %v66
    %v712 = vpop.permute.xlu0 %711
    %715 = vset.pattern.permute.xlu0 0
    %716 = vperm.xlu0 %715, %v67
    %v717 = vpop.permute.xlu0 %716
    %720 = vset.pattern.permute.xlu0 0
    %721 = vperm.xlu0 %720, %v68
    %v722 = vpop.permute.xlu0 %721
    %725 = vset.pattern.permute.xlu0 0
    %726 = vperm.xlu0 %725, %v69
    %v727 = vpop.permute.xlu0 %726
    %730 = vset.pattern.permute.xlu0 0
    %731 = vperm.xlu0 %730, %v70
    %v732 = vpop.permute.xlu0 %731
    %734 = vmatprep.subr.mxu0 0.0
    %735 = vmatpush1.msra.mxu0 %v118
    %736 = vmatprep.subr.mxu0 0.0
    %737 = vmatpush1.msra.mxu0 %v117
    %738 = vmatprep.subr.mxu0 0.0
    %739 = vmatpush1.msra.mxu0 %v116
    %740 = vmatprep.subr.mxu0 0.0
    %741 = vmatpush1.msra.mxu0 %v115
    %742 = vmatprep.subr.mxu0 0.0
    %743 = vmatpush1.msra.mxu0 %v114
    %744 = vmatprep.subr.mxu0 0.0
    %745 = vmatpush1.msra.mxu0 %v113
    %746 = vmatprep.subr.mxu0 0.0
    %747 = vmatpush1.msra.mxu0 %v112
    %748 = vmatprep.subr.mxu0 0.0
    %749 = vmatpush1.msra.mxu0 %v111
    %750 = vmatprep.subr.mxu0 0.0
    %751 = vmatpush1.msra.mxu0 %v110
    %752 = vmatprep.subr.mxu0 0.0
    %753 = vmatpush1.msra.mxu0 %v109
    %754 = vmatprep.subr.mxu0 0.0
    %755 = vmatpush1.msra.mxu0 %v108
    %756 = vmatprep.subr.mxu0 0.0
    %757 = vmatpush1.msra.mxu0 %v107
    %758 = vmatprep.subr.mxu0 0.0
    %759 = vmatpush1.msra.mxu0 %v106
    %760 = vmatprep.subr.mxu0 0.0
    %761 = vmatpush1.msra.mxu0 %v105
    %762 = vmatprep.subr.mxu0 0.0
    %763 = vmatpush1.msra.mxu0 %v104
    %764 = vmatprep.subr.mxu0 0.0
    %765 = vmatpush1.msra.mxu0 %v103
    %766 = vmatprep.subr.mxu0 0.0
    %767 = vmatpush2.msra.mxu0 %v134
    %768 = vmatprep.subr.mxu0 0.0
    %769 = vmatpush2.msra.mxu0 %v133
    %770 = vmatprep.subr.mxu0 0.0
    %771 = vmatpush2.msra.mxu0 %v132
    %772 = vmatprep.subr.mxu0 0.0
    %773 = vmatpush2.msra.mxu0 %v131
    %774 = vmatprep.subr.mxu0 0.0
    %775 = vmatpush2.msra.mxu0 %v130
    %776 = vmatprep.subr.mxu0 0.0
    %777 = vmatpush2.msra.mxu0 %v129
    %778 = vmatprep.subr.mxu0 0.0
    %779 = vmatpush2.msra.mxu0 %v128
    %780 = vmatprep.subr.mxu0 0.0
    %781 = vmatpush2.msra.mxu0 %v127
    %782 = vmatprep.subr.mxu0 0.0
    %783 = vmatpush2.msra.mxu0 %v126
    %784 = vmatprep.subr.mxu0 0.0
    %785 = vmatpush2.msra.mxu0 %v125
    %786 = vmatprep.subr.mxu0 0.0
    %787 = vmatpush2.msra.mxu0 %v124
    %788 = vmatprep.subr.mxu0 0.0
    %789 = vmatpush2.msra.mxu0 %v123
    %790 = vmatprep.subr.mxu0 0.0
    %791 = vmatpush2.msra.mxu0 %v122
    %792 = vmatprep.subr.mxu0 0.0
    %793 = vmatpush2.msra.mxu0 %v121
    %794 = vmatprep.subr.mxu0 0.0
    %795 = vmatpush2.msra.mxu0 %v120
    %796 = vmatprep.subr.mxu0 0.0
    %797 = vmatpush2.msra.mxu0 %v119
    %798 = vmatprep.mubr.f32.mxu0 %v679
    %799 = vmatmul.mubr.f32.gmra.mxu0 %v678
    %v800 = vpop.f32.mrf.mxu0
    %v801 = vadd.f32 %v697, %v800
    %v802 = vpop.f32.mrf.mxu0
    %803 = vmatprep.mubr.f32.mxu0 %v681
    %804 = vmatmul.mubr.f32.gmra.mxu0 %v680
    %v805 = vpop.f32.mrf.mxu0
    %v806 = vadd.f32 %v702, %v805
    %v807 = vpop.f32.mrf.mxu0
    %808 = vmatprep.mubr.f32.mxu0 %v683
    %809 = vmatmul.mubr.f32.gmra.mxu0 %v682
    %v810 = vpop.f32.mrf.mxu0
    %v811 = vadd.f32 %v707, %v810
    %v812 = vpop.f32.mrf.mxu0
    %813 = vmatprep.mubr.f32.mxu0 %v685
    %814 = vmatmul.mubr.f32.gmra.mxu0 %v684
    %v815 = vpop.f32.mrf.mxu0
    %v816 = vadd.f32 %v712, %v815
    %v817 = vpop.f32.mrf.mxu0
    %818 = vmatprep.mubr.f32.mxu0 %v687
    %819 = vmatmul.mubr.f32.gmra.mxu0 %v686
    %v820 = vpop.f32.mrf.mxu0
    %v821 = vadd.f32 %v717, %v820
    %v822 = vpop.f32.mrf.mxu0
    %823 = vmatprep.mubr.f32.mxu0 %v689
    %824 = vmatmul.mubr.f32.gmra.mxu0 %v688
    %v825 = vpop.f32.mrf.mxu0
    %v826 = vadd.f32 %v722, %v825
    %v827 = vpop.f32.mrf.mxu0
    %828 = vmatprep.mubr.f32.mxu0 %v691
    %829 = vmatmul.mubr.f32.gmra.mxu0 %v690
    %v830 = vpop.f32.mrf.mxu0
    %v831 = vadd.f32 %v727, %v830
    %v832 = vpop.f32.mrf.mxu0
    %833 = vmatprep.mubr.f32.mxu0 %v693
    %834 = vmatmul.mubr.f32.gmra.mxu0 %v692
    %v835 = vpop.f32.mrf.mxu0
    %v836 = vadd.f32 %v732, %v835
    %v837 = vpop.f32.mrf.mxu0
    %838 = vdwg.mxu0
    %839 = vst [vmem:[#allocation5] sm:$0xff] %v801
    %840 = vst [vmem:[#allocation5 + $0x8] sm:$0xff] %v806
    %841 = vst [vmem:[#allocation5 + $0x10] sm:$0xff] %v811
    %842 = vst [vmem:[#allocation5 + $0x18] sm:$0xff] %v816
    %843 = vst [vmem:[#allocation5 + $0x20] sm:$0xff] %v821
    %844 = vst [vmem:[#allocation5 + $0x28] sm:$0xff] %v826
    %845 = vst [vmem:[#allocation5 + $0x30] sm:$0xff] %v831
    %846 = vst [vmem:[#allocation5 + $0x38] sm:$0xff] %v836
    %s847 = scalar_lea.vmem %s0, 64
    %v848 = vld [vmem:[%s847] sm:$0xff]
    %v849 = vld [vmem:[%s847 + $0x8] sm:$0xff]
    %v850 = vld [vmem:[%s847 + $0x10] sm:$0xff]
    %v851 = vld [vmem:[%s847 + $0x18] sm:$0xff]
    %v852 = vld [vmem:[%s847 + $0x20] sm:$0xff]
    %v853 = vld [vmem:[%s847 + $0x28] sm:$0xff]
    %v854 = vld [vmem:[%s847 + $0x30] sm:$0xff]
    %v855 = vld [vmem:[%s847 + $0x38] sm:$0xff]
    %v856 = vpack.c.bf16 %v850, %v848
    %v857 = vpack.c.bf16 %v851, %v849
    %v858 = vpack.c.bf16 %v854, %v852
    %v859 = vpack.c.bf16 %v855, %v853
    %860 = vmatprep.subr.bf16.mxu0 0
    %861 = vmatpush1.bf16.msra.mxu0 0
    %862 = vmatprep.subr.bf16.mxu0 0
    %863 = vmatpush1.bf16.msra.mxu0 0
    %864 = vmatprep.subr.bf16.mxu0 0
    %865 = vmatpush1.bf16.msra.mxu0 0
    %866 = vmatprep.subr.bf16.mxu0 0
    %867 = vmatpush1.bf16.msra.mxu0 0
    %868 = vmatprep.subr.bf16.mxu0 0
    %869 = vmatpush1.bf16.msra.mxu0 0
    %870 = vmatprep.subr.bf16.mxu0 0
    %871 = vmatpush1.bf16.msra.mxu0 0
    %872 = vmatprep.subr.bf16.mxu0 %v859
    %873 = vmatpush1.bf16.msra.mxu0 %v858
    %874 = vmatprep.subr.bf16.mxu0 %v857
    %875 = vmatpush1.bf16.msra.mxu0 %v856
    %876 = vmatprep.subr.bf16.mxu0 0
    %877 = vmatpush2.bf16.msra.mxu0 0
    %878 = vmatprep.subr.bf16.mxu0 0
    %879 = vmatpush2.bf16.msra.mxu0 0
    %880 = vmatprep.subr.bf16.mxu0 0
    %881 = vmatpush2.bf16.msra.mxu0 0
    %882 = vmatprep.subr.bf16.mxu0 0
    %883 = vmatpush2.bf16.msra.mxu0 0
    %884 = vmatprep.subr.bf16.mxu0 0
    %885 = vmatpush2.bf16.msra.mxu0 0
    %886 = vmatprep.subr.bf16.mxu0 0
    %887 = vmatpush2.bf16.msra.mxu0 0
    %888 = vmatprep.subr.bf16.mxu0 0
    %889 = vmatpush2.bf16.msra.mxu0 0
    %890 = vmatprep.subr.bf16.mxu0 0
    %891 = vmatpush2.bf16.msra.mxu0 0
    %892 = vmatprep.mubr.bf16.mxu0 0
    %893 = vmatmul.mubr.bf16.gmra.mxu0 %v216
    %v894 = vpop.f32.mrf.mxu0
    %v895 = vadd.f32 %v157, %v894
    %v896 = vpop.f32.mrf.mxu0
    %v897 = vadd.f32 %v157, %v896
    %v898 = vpop.f32.mrf.mxu0
    %v899 = vadd.f32 %v162, %v898
    %v900 = vpop.f32.mrf.mxu0
    %v901 = vadd.f32 %v162, %v900
    %902 = vmatprep.mubr.bf16.mxu0 0
    %903 = vmatmul.mubr.bf16.gmra.mxu0 %v219
    %v904 = vpop.f32.mrf.mxu0
    %v905 = vadd.f32 %v167, %v904
    %v906 = vpop.f32.mrf.mxu0
    %v907 = vadd.f32 %v167, %v906
    %v908 = vpop.f32.mrf.mxu0
    %v909 = vadd.f32 %v172, %v908
    %v910 = vpop.f32.mrf.mxu0
    %v911 = vadd.f32 %v172, %v910
    %912 = vmatprep.mubr.bf16.mxu0 0
    %913 = vmatmul.mubr.bf16.gmra.mxu0 %v222
    %v914 = vpop.f32.mrf.mxu0
    %v915 = vadd.f32 %v177, %v914
    %v916 = vpop.f32.mrf.mxu0
    %v917 = vadd.f32 %v177, %v916
    %v918 = vpop.f32.mrf.mxu0
    %v919 = vadd.f32 %v182, %v918
    %v920 = vpop.f32.mrf.mxu0
    %v921 = vadd.f32 %v182, %v920
    %922 = vmatprep.mubr.bf16.mxu0 0
    %923 = vmatmul.mubr.bf16.gmra.mxu0 %v225
    %v924 = vpop.f32.mrf.mxu0
    %v925 = vadd.f32 %v187, %v924
    %v926 = vpop.f32.mrf.mxu0
    %v927 = vadd.f32 %v187, %v926
    %v928 = vpop.f32.mrf.mxu0
    %v929 = vadd.f32 %v192, %v928
    %v930 = vpop.f32.mrf.mxu0
    %v931 = vadd.f32 %v192, %v930
    %932 = vdwg.mxu0
    %v933 = vmul.f32 %v895, 0.5
    %v934 = vmul.f32 %v897, 0.5
    %v935 = vmul.f32 %v899, 0.5
    %v936 = vmul.f32 %v901, 0.5
    %v937 = vmul.f32 %v905, 0.5
    %v938 = vmul.f32 %v907, 0.5
    %v939 = vmul.f32 %v909, 0.5
    %v940 = vmul.f32 %v911, 0.5
    %v941 = vmul.f32 %v915, 0.5
    %v942 = vmul.f32 %v917, 0.5
    %v943 = vmul.f32 %v919, 0.5
    %v944 = vmul.f32 %v921, 0.5
    %v945 = vmul.f32 %v925, 0.5
    %v946 = vmul.f32 %v927, 0.5
    %v947 = vmul.f32 %v929, 0.5
    %v948 = vmul.f32 %v931, 0.5
    %v949 = vtanh.pop %v933
    %v950 = vtanh.pop %v934
    %v951 = vtanh.pop %v935
    %v952 = vtanh.pop %v936
    %v953 = vtanh.pop %v937
    %v954 = vtanh.pop %v938
    %v955 = vtanh.pop %v939
    %v956 = vtanh.pop %v940
    %v957 = vtanh.pop %v941
    %v958 = vtanh.pop %v942
    %v959 = vtanh.pop %v943
    %v960 = vtanh.pop %v944
    %v961 = vtanh.pop %v945
    %v962 = vtanh.pop %v946
    %v963 = vtanh.pop %v947
    %v964 = vtanh.pop %v948
    %v965 = vmul.f32 %v949, 0.5
    %v966 = vmul.f32 %v950, 0.5
    %v967 = vmul.f32 %v951, 0.5
    %v968 = vmul.f32 %v952, 0.5
    %v969 = vmul.f32 %v953, 0.5
    %v970 = vmul.f32 %v954, 0.5
    %v971 = vmul.f32 %v955, 0.5
    %v972 = vmul.f32 %v956, 0.5
    %v973 = vmul.f32 %v957, 0.5
    %v974 = vmul.f32 %v958, 0.5
    %v975 = vmul.f32 %v959, 0.5
    %v976 = vmul.f32 %v960, 0.5
    %v977 = vmul.f32 %v961, 0.5
    %v978 = vmul.f32 %v962, 0.5
    %v979 = vmul.f32 %v963, 0.5
    %v980 = vmul.f32 %v964, 0.5
    %v981 = vadd.f32 %v965, 0.5
    %v982 = vadd.f32 %v966, 0.5
    %v983 = vadd.f32 %v967, 0.5
    %v984 = vadd.f32 %v968, 0.5
    %v985 = vadd.f32 %v969, 0.5
    %v986 = vadd.f32 %v970, 0.5
    %v987 = vadd.f32 %v971, 0.5
    %v988 = vadd.f32 %v972, 0.5
    %v989 = vadd.f32 %v973, 0.5
    %v990 = vadd.f32 %v974, 0.5
    %v991 = vadd.f32 %v975, 0.5
    %v992 = vadd.f32 %v976, 0.5
    %v993 = vadd.f32 %v977, 0.5
    %v994 = vadd.f32 %v978, 0.5
    %v995 = vadd.f32 %v979, 0.5
    %v996 = vadd.f32 %v980, 0.5
    %v997 = vmul.f32 %v895, %v981
    %v998 = vmul.f32 %v897, %v982
    %v999 = vmul.f32 %v899, %v983
    %v1000 = vmul.f32 %v901, %v984
    %v1001 = vmul.f32 %v905, %v985
    %v1002 = vmul.f32 %v907, %v986
    %v1003 = vmul.f32 %v909, %v987
    %v1004 = vmul.f32 %v911, %v988
    %v1005 = vmul.f32 %v915, %v989
    %v1006 = vmul.f32 %v917, %v990
    %v1007 = vmul.f32 %v919, %v991
    %v1008 = vmul.f32 %v921, %v992
    %v1009 = vmul.f32 %v925, %v993
    %v1010 = vmul.f32 %v927, %v994
    %v1011 = vmul.f32 %v929, %v995
    %v1012 = vmul.f32 %v931, %v996
    %1013 = vrot.lane.b32.xlu0 %v997, 1
    %v1014 = vpop.permute.xlu0 %1013
    %1015 = vrot.lane.b32.xlu0 %v999, 1
    %v1016 = vpop.permute.xlu0 %1015
    %1017 = vrot.lane.b32.xlu0 %v1001, 1
    %v1018 = vpop.permute.xlu0 %1017
    %1019 = vrot.lane.b32.xlu0 %v1003, 1
    %v1020 = vpop.permute.xlu0 %1019
    %1021 = vrot.lane.b32.xlu0 %v1005, 1
    %v1022 = vpop.permute.xlu0 %1021
    %1023 = vrot.lane.b32.xlu0 %v1007, 1
    %v1024 = vpop.permute.xlu0 %1023
    %1025 = vrot.lane.b32.xlu0 %v1009, 1
    %v1026 = vpop.permute.xlu0 %1025
    %1027 = vrot.lane.b32.xlu0 %v1011, 1
    %v1028 = vpop.permute.xlu0 %1027
    %1029 = vrot.lane.b32.xlu0 %v998, 1
    %v1030 = vpop.permute.xlu0 %1029
    %1031 = vrot.lane.b32.xlu0 %v1000, 1
    %v1032 = vpop.permute.xlu0 %1031
    %1033 = vrot.lane.b32.xlu0 %v1002, 1
    %v1034 = vpop.permute.xlu0 %1033
    %1035 = vrot.lane.b32.xlu0 %v1004, 1
    %v1036 = vpop.permute.xlu0 %1035
    %1037 = vrot.lane.b32.xlu0 %v1006, 1
    %v1038 = vpop.permute.xlu0 %1037
    %1039 = vrot.lane.b32.xlu0 %v1008, 1
    %v1040 = vpop.permute.xlu0 %1039
    %1041 = vrot.lane.b32.xlu0 %v1010, 1
    %v1042 = vpop.permute.xlu0 %1041
    %1043 = vrot.lane.b32.xlu0 %v1012, 1
    %v1044 = vpop.permute.xlu0 %1043
    %v1045 = vsel %vm412, %v1014, %v1030
    %v1046 = vsel %vm412, %v1016, %v1032
    %v1047 = vsel %vm412, %v1018, %v1034
    %v1048 = vsel %vm412, %v1020, %v1036
    %v1049 = vsel %vm412, %v1022, %v1038
    %v1050 = vsel %vm412, %v1024, %v1040
    %v1051 = vsel %vm412, %v1026, %v1042
    %v1052 = vsel %vm412, %v1028, %v1044
    %v1053 = vsel %vm412, %v1030, %v1014
    %v1054 = vsel %vm412, %v1032, %v1016
    %v1055 = vsel %vm412, %v1034, %v1018
    %v1056 = vsel %vm412, %v1036, %v1020
    %v1057 = vsel %vm412, %v1038, %v1022
    %v1058 = vsel %vm412, %v1040, %v1024
    %v1059 = vsel %vm412, %v1042, %v1026
    %v1060 = vsel %vm412, %v1044, %v1028
    %v1061 = vsel %vm138, %v1053, 0.0
    %v1062 = vsel %vm139, %v1045, 0.0
    %v1063 = vsel %vm138, %v1054, 0.0
    %v1064 = vsel %vm139, %v1046, 0.0
    %v1065 = vsel %vm138, %v1055, 0.0
    %v1066 = vsel %vm139, %v1047, 0.0
    %v1067 = vsel %vm138, %v1056, 0.0
    %v1068 = vsel %vm139, %v1048, 0.0
    %v1069 = vsel %vm138, %v1057, 0.0
    %v1070 = vsel %vm139, %v1049, 0.0
    %v1071 = vsel %vm138, %v1058, 0.0
    %v1072 = vsel %vm139, %v1050, 0.0
    %v1073 = vsel %vm138, %v1059, 0.0
    %v1074 = vsel %vm139, %v1051, 0.0
    %v1075 = vsel %vm138, %v1060, 0.0
    %v1076 = vsel %vm139, %v1052, 0.0
    %v1077 = vmul.f32 %v448, %v1061
    %v1078 = vmul.f32 %v448, %v1062
    %v1079 = vmul.f32 %v453, %v1063
    %v1080 = vmul.f32 %v453, %v1064
    %v1081 = vmul.f32 %v458, %v1065
    %v1082 = vmul.f32 %v458, %v1066
    %v1083 = vmul.f32 %v463, %v1067
    %v1084 = vmul.f32 %v463, %v1068
    %v1085 = vmul.f32 %v468, %v1069
    %v1086 = vmul.f32 %v468, %v1070
    %v1087 = vmul.f32 %v473, %v1071
    %v1088 = vmul.f32 %v473, %v1072
    %v1089 = vmul.f32 %v478, %v1073
    %v1090 = vmul.f32 %v478, %v1074
    %v1091 = vmul.f32 %v483, %v1075
    %v1092 = vmul.f32 %v483, %v1076
    %v1093 = vmul.f32 %v503, %v997
    %v1094 = vmul.f32 %v503, %v998
    %v1095 = vmul.f32 %v507, %v999
    %v1096 = vmul.f32 %v507, %v1000
    %v1097 = vmul.f32 %v511, %v1001
    %v1098 = vmul.f32 %v511, %v1002
    %v1099 = vmul.f32 %v515, %v1003
    %v1100 = vmul.f32 %v515, %v1004
    %v1101 = vmul.f32 %v519, %v1005
    %v1102 = vmul.f32 %v519, %v1006
    %v1103 = vmul.f32 %v523, %v1007
    %v1104 = vmul.f32 %v523, %v1008
    %v1105 = vmul.f32 %v527, %v1009
    %v1106 = vmul.f32 %v527, %v1010
    %v1107 = vmul.f32 %v531, %v1011
    %v1108 = vmul.f32 %v531, %v1012
    %v1109 = vadd.f32 %v1077, %v1093
    %v1110 = vadd.f32 %v1078, %v1094
    %v1111 = vadd.f32 %v1079, %v1095
    %v1112 = vadd.f32 %v1080, %v1096
    %v1113 = vadd.f32 %v1081, %v1097
    %v1114 = vadd.f32 %v1082, %v1098
    %v1115 = vadd.f32 %v1083, %v1099
    %v1116 = vadd.f32 %v1084, %v1100
    %v1117 = vadd.f32 %v1085, %v1101
    %v1118 = vadd.f32 %v1086, %v1102
    %v1119 = vadd.f32 %v1087, %v1103
    %v1120 = vadd.f32 %v1088, %v1104
    %v1121 = vadd.f32 %v1089, %v1105
    %v1122 = vadd.f32 %v1090, %v1106
    %v1123 = vadd.f32 %v1091, %v1107
    %v1124 = vadd.f32 %v1092, %v1108
    %1125 = vrot.lane.b32.xlu0 %v997, 127
    %v1126 = vpop.permute.xlu0 %1125
    %1127 = vrot.lane.b32.xlu0 %v999, 127
    %v1128 = vpop.permute.xlu0 %1127
    %1129 = vrot.lane.b32.xlu0 %v1001, 127
    %v1130 = vpop.permute.xlu0 %1129
    %1131 = vrot.lane.b32.xlu0 %v1003, 127
    %v1132 = vpop.permute.xlu0 %1131
    %1133 = vrot.lane.b32.xlu0 %v1005, 127
    %v1134 = vpop.permute.xlu0 %1133
    %1135 = vrot.lane.b32.xlu0 %v1007, 127
    %v1136 = vpop.permute.xlu0 %1135
    %1137 = vrot.lane.b32.xlu0 %v1009, 127
    %v1138 = vpop.permute.xlu0 %1137
    %1139 = vrot.lane.b32.xlu0 %v1011, 127
    %v1140 = vpop.permute.xlu0 %1139
    %1141 = vrot.lane.b32.xlu0 %v998, 127
    %v1142 = vpop.permute.xlu0 %1141
    %1143 = vrot.lane.b32.xlu0 %v1000, 127
    %v1144 = vpop.permute.xlu0 %1143
    %1145 = vrot.lane.b32.xlu0 %v1002, 127
    %v1146 = vpop.permute.xlu0 %1145
    %1147 = vrot.lane.b32.xlu0 %v1004, 127
    %v1148 = vpop.permute.xlu0 %1147
    %1149 = vrot.lane.b32.xlu0 %v1006, 127
    %v1150 = vpop.permute.xlu0 %1149
    %1151 = vrot.lane.b32.xlu0 %v1008, 127
    %v1152 = vpop.permute.xlu0 %1151
    %1153 = vrot.lane.b32.xlu0 %v1010, 127
    %v1154 = vpop.permute.xlu0 %1153
    %1155 = vrot.lane.b32.xlu0 %v1012, 127
    %v1156 = vpop.permute.xlu0 %1155
    %v1157 = vsel %vm597, %v1126, %v1142
    %v1158 = vsel %vm597, %v1128, %v1144
    %v1159 = vsel %vm597, %v1130, %v1146
    %v1160 = vsel %vm597, %v1132, %v1148
    %v1161 = vsel %vm597, %v1134, %v1150
    %v1162 = vsel %vm597, %v1136, %v1152
    %v1163 = vsel %vm597, %v1138, %v1154
    %v1164 = vsel %vm597, %v1140, %v1156
    %v1165 = vsel %vm597, %v1142, %v1126
    %v1166 = vsel %vm597, %v1144, %v1128
    %v1167 = vsel %vm597, %v1146, %v1130
    %v1168 = vsel %vm597, %v1148, %v1132
    %v1169 = vsel %vm597, %v1150, %v1134
    %v1170 = vsel %vm597, %v1152, %v1136
    %v1171 = vsel %vm597, %v1154, %v1138
    %v1172 = vsel %vm597, %v1156, %v1140
    %v1173 = vsel %vm140, %v1157, 0.0
    %v1174 = vsel %vm141, %v1165, 0.0
    %v1175 = vsel %vm140, %v1158, 0.0
    %v1176 = vsel %vm141, %v1166, 0.0
    %v1177 = vsel %vm140, %v1159, 0.0
    %v1178 = vsel %vm141, %v1167, 0.0
    %v1179 = vsel %vm140, %v1160, 0.0
    %v1180 = vsel %vm141, %v1168, 0.0
    %v1181 = vsel %vm140, %v1161, 0.0
    %v1182 = vsel %vm141, %v1169, 0.0
    %v1183 = vsel %vm140, %v1162, 0.0
    %v1184 = vsel %vm141, %v1170, 0.0
    %v1185 = vsel %vm140, %v1163, 0.0
    %v1186 = vsel %vm141, %v1171, 0.0
    %v1187 = vsel %vm140, %v1164, 0.0
    %v1188 = vsel %vm141, %v1172, 0.0
    %v1189 = vmul.f32 %v632, %v1173
    %v1190 = vmul.f32 %v632, %v1174
    %v1191 = vmul.f32 %v636, %v1175
    %v1192 = vmul.f32 %v636, %v1176
    %v1193 = vmul.f32 %v640, %v1177
    %v1194 = vmul.f32 %v640, %v1178
    %v1195 = vmul.f32 %v644, %v1179
    %v1196 = vmul.f32 %v644, %v1180
    %v1197 = vmul.f32 %v648, %v1181
    %v1198 = vmul.f32 %v648, %v1182
    %v1199 = vmul.f32 %v652, %v1183
    %v1200 = vmul.f32 %v652, %v1184
    %v1201 = vmul.f32 %v656, %v1185
    %v1202 = vmul.f32 %v656, %v1186
    %v1203 = vmul.f32 %v660, %v1187
    %v1204 = vmul.f32 %v660, %v1188
    %v1205 = vadd.f32 %v1109, %v1189
    %v1206 = vadd.f32 %v1110, %v1190
    %v1207 = vadd.f32 %v1111, %v1191
    %v1208 = vadd.f32 %v1112, %v1192
    %v1209 = vadd.f32 %v1113, %v1193
    %v1210 = vadd.f32 %v1114, %v1194
    %v1211 = vadd.f32 %v1115, %v1195
    %v1212 = vadd.f32 %v1116, %v1196
    %v1213 = vadd.f32 %v1117, %v1197
    %v1214 = vadd.f32 %v1118, %v1198
    %v1215 = vadd.f32 %v1119, %v1199
    %v1216 = vadd.f32 %v1120, %v1200
    %v1217 = vadd.f32 %v1121, %v1201
    %v1218 = vadd.f32 %v1122, %v1202
    %v1219 = vadd.f32 %v1123, %v1203
    %v1220 = vadd.f32 %v1124, %v1204
    %1221 = vmatprep.subr.mxu0 0.0
    %1222 = vmatpush1.msra.mxu0 %v118
    %1223 = vmatprep.subr.mxu0 0.0
    %1224 = vmatpush1.msra.mxu0 %v117
    %1225 = vmatprep.subr.mxu0 0.0
    %1226 = vmatpush1.msra.mxu0 %v116
    %1227 = vmatprep.subr.mxu0 0.0
    %1228 = vmatpush1.msra.mxu0 %v115
    %1229 = vmatprep.subr.mxu0 0.0
    %1230 = vmatpush1.msra.mxu0 %v114
    %1231 = vmatprep.subr.mxu0 0.0
    %1232 = vmatpush1.msra.mxu0 %v113
    %1233 = vmatprep.subr.mxu0 0.0
    %1234 = vmatpush1.msra.mxu0 %v112
    %1235 = vmatprep.subr.mxu0 0.0
    %1236 = vmatpush1.msra.mxu0 %v111
    %1237 = vmatprep.subr.mxu0 0.0
    %1238 = vmatpush1.msra.mxu0 %v110
    %1239 = vmatprep.subr.mxu0 0.0
    %1240 = vmatpush1.msra.mxu0 %v109
    %1241 = vmatprep.subr.mxu0 0.0
    %1242 = vmatpush1.msra.mxu0 %v108
    %1243 = vmatprep.subr.mxu0 0.0
    %1244 = vmatpush1.msra.mxu0 %v107
    %1245 = vmatprep.subr.mxu0 0.0
    %1246 = vmatpush1.msra.mxu0 %v106
    %1247 = vmatprep.subr.mxu0 0.0
    %1248 = vmatpush1.msra.mxu0 %v105
    %1249 = vmatprep.subr.mxu0 0.0
    %1250 = vmatpush1.msra.mxu0 %v104
    %1251 = vmatprep.subr.mxu0 0.0
    %1252 = vmatpush1.msra.mxu0 %v103
    %1253 = vmatprep.subr.mxu0 0.0
    %1254 = vmatpush2.msra.mxu0 %v134
    %1255 = vmatprep.subr.mxu0 0.0
    %1256 = vmatpush2.msra.mxu0 %v133
    %1257 = vmatprep.subr.mxu0 0.0
    %1258 = vmatpush2.msra.mxu0 %v132
    %1259 = vmatprep.subr.mxu0 0.0
    %1260 = vmatpush2.msra.mxu0 %v131
    %1261 = vmatprep.subr.mxu0 0.0
    %1262 = vmatpush2.msra.mxu0 %v130
    %1263 = vmatprep.subr.mxu0 0.0
    %1264 = vmatpush2.msra.mxu0 %v129
    %1265 = vmatprep.subr.mxu0 0.0
    %1266 = vmatpush2.msra.mxu0 %v128
    %1267 = vmatprep.subr.mxu0 0.0
    %1268 = vmatpush2.msra.mxu0 %v127
    %1269 = vmatprep.subr.mxu0 0.0
    %1270 = vmatpush2.msra.mxu0 %v126
    %1271 = vmatprep.subr.mxu0 0.0
    %1272 = vmatpush2.msra.mxu0 %v125
    %1273 = vmatprep.subr.mxu0 0.0
    %1274 = vmatpush2.msra.mxu0 %v124
    %1275 = vmatprep.subr.mxu0 0.0
    %1276 = vmatpush2.msra.mxu0 %v123
    %1277 = vmatprep.subr.mxu0 0.0
    %1278 = vmatpush2.msra.mxu0 %v122
    %1279 = vmatprep.subr.mxu0 0.0
    %1280 = vmatpush2.msra.mxu0 %v121
    %1281 = vmatprep.subr.mxu0 0.0
    %1282 = vmatpush2.msra.mxu0 %v120
    %1283 = vmatprep.subr.mxu0 0.0
    %1284 = vmatpush2.msra.mxu0 %v119
    %1285 = vmatprep.mubr.f32.mxu0 %v1206
    %1286 = vmatmul.mubr.f32.gmra.mxu0 %v1205
    %v1287 = vpop.f32.mrf.mxu0
    %v1288 = vadd.f32 %v697, %v1287
    %v1289 = vpop.f32.mrf.mxu0
    %1290 = vmatprep.mubr.f32.mxu0 %v1208
    %1291 = vmatmul.mubr.f32.gmra.mxu0 %v1207
    %v1292 = vpop.f32.mrf.mxu0
    %v1293 = vadd.f32 %v702, %v1292
    %v1294 = vpop.f32.mrf.mxu0
    %1295 = vmatprep.mubr.f32.mxu0 %v1210
    %1296 = vmatmul.mubr.f32.gmra.mxu0 %v1209
    %v1297 = vpop.f32.mrf.mxu0
    %v1298 = vadd.f32 %v707, %v1297
    %v1299 = vpop.f32.mrf.mxu0
    %1300 = vmatprep.mubr.f32.mxu0 %v1212
    %1301 = vmatmul.mubr.f32.gmra.mxu0 %v1211
    %v1302 = vpop.f32.mrf.mxu0
    %v1303 = vadd.f32 %v712, %v1302
    %v1304 = vpop.f32.mrf.mxu0
    %1305 = vmatprep.mubr.f32.mxu0 %v1214
    %1306 = vmatmul.mubr.f32.gmra.mxu0 %v1213
    %v1307 = vpop.f32.mrf.mxu0
    %v1308 = vadd.f32 %v717, %v1307
    %v1309 = vpop.f32.mrf.mxu0
    %1310 = vmatprep.mubr.f32.mxu0 %v1216
    %1311 = vmatmul.mubr.f32.gmra.mxu0 %v1215
    %v1312 = vpop.f32.mrf.mxu0
    %v1313 = vadd.f32 %v722, %v1312
    %v1314 = vpop.f32.mrf.mxu0
    %1315 = vmatprep.mubr.f32.mxu0 %v1218
    %1316 = vmatmul.mubr.f32.gmra.mxu0 %v1217
    %v1317 = vpop.f32.mrf.mxu0
    %v1318 = vadd.f32 %v727, %v1317
    %v1319 = vpop.f32.mrf.mxu0
    %1320 = vmatprep.mubr.f32.mxu0 %v1220
    %1321 = vmatmul.mubr.f32.gmra.mxu0 %v1219
    %v1322 = vpop.f32.mrf.mxu0
    %v1323 = vadd.f32 %v732, %v1322
    %v1324 = vpop.f32.mrf.mxu0
    %1325 = vdwg.mxu0
    %s1326 = scalar_lea.vmem [#allocation5], 64
    %1327 = vst [vmem:[%s1326] sm:$0xff] %v1288
    %1328 = vst [vmem:[%s1326 + $0x8] sm:$0xff] %v1293
    %1329 = vst [vmem:[%s1326 + $0x10] sm:$0xff] %v1298
    %1330 = vst [vmem:[%s1326 + $0x18] sm:$0xff] %v1303
    %1331 = vst [vmem:[%s1326 + $0x20] sm:$0xff] %v1308
    %1332 = vst [vmem:[%s1326 + $0x28] sm:$0xff] %v1313
    %1333 = vst [vmem:[%s1326 + $0x30] sm:$0xff] %v1318
    %1334 = vst [vmem:[%s1326 + $0x38] sm:$0xff] %v1323
    // Predicated region
    $region30: #{tpu_custom_call.1} parent=1 // pred_check
      _
    $region31: #{tpu_custom_call.1} parent=1 // pred_check_branch
      %1336 = sbr.rel (0) target = $region33
    $region32: #{tpu_custom_call.1} parent=1 // pred_region
      %s1338 = ssub.s32 2048, 2048
      %1339 = vsyncadd [#allocation4], %s1338
      %s1340 = sshll.u32 [#allocation5], 4
      %s1341 = int_to_ptr.vmem [resolvable:$true] %s1340
      %1346 = dma.vmem_to_hbm [thread:$0]  %s1341, 2048, %s6, [#allocation4], 128, 128, 8
    $region33: #{tpu_custom_call.1} parent=1 // pred_fallthru
      _
    // Predicated region
    $region34: #{tpu_custom_call.1} parent=1 // pred_check
      _
    $region35: #{tpu_custom_call.1} parent=1 // pred_check_branch
      %1348 = sbr.rel (0) target = $region37
    $region36: #{tpu_custom_call.1} parent=1 // pred_region
      %1349 = dma.done [#allocation4], 2048
    $region37: #{tpu_custom_call.1} parent=1 // pred_fallthru
      _
    %1350 = vsyncpa [#allocation3], 1
    %1351 = vsyncpa [#allocation4], 1

</llo_original>
